<compile_context>
chip_gen: v5e
topology: v5e:2x2
jax: 0.10.0
libtpu: 0.0.40
codegen_flags: <defaults>
</compile_context>

<pallas_src>
import functools
import math

import jax
import jax.numpy as jnp
from jax.experimental import pallas as pl
from jax.experimental.pallas import tpu as pltpu

_LANE = 128
_SUBLANE = 8


def _round_up(x, m):
    return ((x + m - 1) // m) * m


def _cdiv(a, b):
    return -(-a // b)


def _encoder_kernel(x_ref, *wb_and_out, num_linear, nclasses, ninput,
                    compute_dtype, mxu_precision):
    """refs = (x, w1, b1, ..., wL, bL, out).

    x   : (tr, nclasses*ninput)  one tile of rounds, classes packed on lanes
    wi  : (in_dim, nh_p) compute_dtype   bi : (1, nh_p) f32   (VMEM resident)
    out : (tr, nh_p) f32
    """
    o_ref = wb_and_out[-1]
    wb = wb_and_out[:-1]

    # Load resident weights/biases once (trace-level CSE of repeated uses).
    ws = [wb[2 * i][...] for i in range(num_linear)]
    bs = [wb[2 * i + 1][...] for i in range(num_linear)]

    def mm(a, w):
        return jnp.dot(a.astype(compute_dtype), w,
                       preferred_element_type=jnp.float32,
                       precision=mxu_precision)

    x = x_ref[...].astype(jnp.float32)          # (tr, nclasses*ninput)

    # Hidden layers per class; classes are independent rows of the MLP, so we
    # can sum their post-ReLU activations and apply the final Linear once on
    # the mean (mean commutes with an affine layer).
    acc = None
    for c in range(nclasses):
        h = x[:, c * ninput:(c + 1) * ninput]   # (tr, ninput) lane slice
        for i in range(num_linear - 1):
            h = mm(h, ws[i]) + bs[i]
            h = jnp.maximum(h, 0.0)
        acc = h if acc is None else acc + h

    hbar = acc * jnp.float32(1.0 / nclasses)    # per-round mean
    out = mm(hbar, ws[num_linear - 1]) + bs[num_linear - 1]
    o_ref[...] = out.astype(o_ref.dtype)


def init_encoder_params(key, ninput, nh, nlayers):
    """Matches torch.nn.Linear init; weights stored as (in, out) so y = x@W+b."""
    if nlayers == 1:
        dims = [(ninput, nh)]
    else:
        dims = [(ninput, nh)] + [(nh, nh)] * (nlayers - 2) + [(nh, nh)]
    params = []
    for i, (fan_in, fan_out) in enumerate(dims):
        kw, kb = jax.random.split(jax.random.fold_in(key, i))
        bound = 1.0 / math.sqrt(fan_in)
        w = jax.random.uniform(kw, (fan_in, fan_out), jnp.float32, -bound, bound)
        b = jax.random.uniform(kb, (1, fan_out), jnp.float32, -bound, bound)
        params.append((w, b))
    return params


def encoder_forward(fv, params, *, compute_dtype=jnp.bfloat16,
                    max_rounds_per_tile=4096):
    """Pallas implementation of encoder.forward.

    fv: (rounds, nclasses, ninput) float32  ->  (rounds, nh) float32
    """
    rounds, nclasses, ninput = fv.shape
    nh = params[-1][0].shape[1]
    num_linear = len(params)
    nh_p = _round_up(nh, _LANE)

    # Free metadata reshape (row-major contiguous): no HBM rewrite, no padding.
    x = fv.reshape(rounds, nclasses * ninput)

    # Pad weights/biases to lane-aligned widths (zero pads are exact) and cast
    # weights to the MXU compute dtype.
    flat_params = []
    for li, (w, b) in enumerate(params):
        in_dim = ninput if li == 0 else nh_p
        w_p = jnp.pad(w, ((0, in_dim - w.shape[0]), (0, nh_p - w.shape[1])))
        b_p = jnp.pad(b, ((0, 0), (0, nh_p - b.shape[1])))
        flat_params += [w_p.astype(compute_dtype), b_p.astype(jnp.float32)]

    # ---- generation-aware VMEM budget & tile sizing ------------------------
    try:
        vmem_cap = int(pltpu.get_tpu_info().vmem_capacity_bytes)
    except Exception:
        vmem_cap = 64 << 20      # conservative fallback (v7x per-core)
    budget = int(0.80 * vmem_cap)

    itemsize = jnp.dtype(compute_dtype).itemsize
    resident = sum(int(a.size) * a.dtype.itemsize for a in flat_params)
    resident *= 2  # assume Mosaic double-buffers the (grid-invariant) weights
    # TODO(synk): mark weight/bias BlockSpecs pipeline_mode=pl.Buffered(1) and
    # add a layer-streaming (emit_pipeline) fallback when resident weights
    # approach the v7x 64 MiB budget (very large nh).

    per_round = 2 * nclasses * ninput * 4            # x tile, double-buffered
    per_round += nh_p * (4 + 4 + itemsize + 4)       # h, acc, cast copy, dot out
    per_round += 2 * nh_p * 4                        # out tile, double-buffered
    rounds_budget = (budget - resident) // max(per_round, 1)
    rounds_budget = max(64, min(int(rounds_budget), max_rounds_per_tile))

    if rounds_budget >= rounds:
        if rounds >= 2 * _SUBLANE:
            # Split into >=2 aligned tiles so v7x can use both TensorCores.
            tr = _round_up(_cdiv(rounds, 2), _SUBLANE)
        else:
            tr = rounds            # tiny problem: single full-extent tile
    else:
        tr = max(_SUBLANE, (rounds_budget // _SUBLANE) * _SUBLANE)
        if tr >= rounds:
            tr = rounds
    n_tiles = _cdiv(rounds, tr)

    in_specs = [pl.BlockSpec((tr, nclasses * ninput), lambda i: (i, 0))]
    for li in range(num_linear):
        in_dim = ninput if li == 0 else nh_p
        in_specs.append(pl.BlockSpec((in_dim, nh_p), lambda i: (0, 0)))
        in_specs.append(pl.BlockSpec((1, nh_p), lambda i: (0, 0)))
    out_spec = pl.BlockSpec((tr, nh_p), lambda i: (i, 0))

    vmem_need = resident
    vmem_need += 2 * tr * nclasses * ninput * 4      # x tiles
    vmem_need += 2 * tr * nh_p * 4                   # out tiles
    vmem_need += 4 * tr * nh_p * 4                   # activation headroom
    vmem_limit = max(vmem_need + (8 << 20), 32 << 20)
    vmem_limit = int(min(vmem_limit, int(0.85 * vmem_cap)))

    mxu_precision = (jax.lax.Precision.HIGHEST
                     if jnp.dtype(compute_dtype) == jnp.dtype(jnp.float32)
                     else None)
    kernel = functools.partial(
        _encoder_kernel, num_linear=num_linear, nclasses=nclasses,
        ninput=ninput, compute_dtype=compute_dtype, mxu_precision=mxu_precision)

    result = pl.pallas_call(
        kernel,
        out_shape=jax.ShapeDtypeStruct((rounds, nh_p), jnp.float32),
        grid=(n_tiles,),
        in_specs=in_specs,
        out_specs=out_spec,
        compiler_params=pltpu.CompilerParams(
            dimension_semantics=("parallel",),
            vmem_limit_bytes=vmem_limit,
        ),
    )(x, *flat_params)

    return result[:, :nh]


def encoder_reference(fv, params):
    """Pure-JAX reference of the PyTorch forward pass (f32, HIGHEST precision)."""
    rounds, nclasses, ninput = fv.shape
    h = fv.reshape(rounds * nclasses, ninput)
    for i, (w, b) in enumerate(params):
        h = jnp.dot(h, w, precision=jax.lax.Precision.HIGHEST) + b
        if i < len(params) - 1:
            h = jnp.maximum(h, 0.0)
    return h.reshape(rounds, nclasses, -1).mean(axis=1)


if __name__ == "__main__":
    key = jax.random.PRNGKey(0)

    # --- small demo shapes (single-tile path) ---
    rounds, nclasses, ninput, nh, nlayers = 2, 4, 16, 32, 3
    k_fv, k_par = jax.random.split(key)
    fv = jax.random.normal(k_fv, (rounds, nclasses, ninput), jnp.float32)
    params = init_encoder_params(k_par, ninput, nh, nlayers)
    ref = encoder_reference(fv, params)

    out_f32 = jax.block_until_ready(
        encoder_forward(fv, params, compute_dtype=jnp.float32))
    assert out_f32.shape == (rounds, nh)
    assert jnp.allclose(out_f32, ref, atol=1e-4, rtol=1e-4), "mismatch (f32)"

    out_bf16 = jax.block_until_ready(encoder_forward(fv, params))
    assert out_bf16.shape == (rounds, nh)
    assert jnp.allclose(out_bf16, ref, atol=5e-2, rtol=5e-2), "mismatch (bf16)"

    # --- larger shape: multi-tile grid + ragged last round-tile ---
    rounds2 = 150
    k_fv2, k_par2 = jax.random.split(jax.random.fold_in(key, 7))
    fv2 = jax.random.normal(k_fv2, (rounds2, nclasses, ninput), jnp.float32)
    params2 = init_encoder_params(k_par2, ninput, nh, nlayers)
    ref2 = encoder_reference(fv2, params2)

    out2_f32 = jax.block_until_ready(
        encoder_forward(fv2, params2, compute_dtype=jnp.float32))
    assert out2_f32.shape == (rounds2, nh)
    assert jnp.allclose(out2_f32, ref2, atol=1e-4, rtol=1e-4), "mismatch (grid f32)"

    out2_bf16 = jax.block_until_ready(encoder_forward(fv2, params2))
    assert jnp.allclose(out2_bf16, ref2, atol=5e-2, rtol=5e-2), "mismatch (grid bf16)"

    print("KERNEL_OK")
</pallas_src>

<mosaic_0001>
module attributes {stable_mosaic.version = 11 : i64} {
  func.func @_encoder_kernel(%arg0: i32, %arg1: memref<2x64xf32, #tpu.memory_space<vmem>>, %arg2: memref<16x128xf32, #tpu.memory_space<vmem>>, %arg3: memref<1x128xf32, #tpu.memory_space<vmem>>, %arg4: memref<128x128xf32, #tpu.memory_space<vmem>>, %arg5: memref<1x128xf32, #tpu.memory_space<vmem>>, %arg6: memref<128x128xf32, #tpu.memory_space<vmem>>, %arg7: memref<1x128xf32, #tpu.memory_space<vmem>>, %arg8: memref<2x128xf32, #tpu.memory_space<vmem>>) attributes {dimension_semantics = [#tpu.dimension_semantics<parallel>], iteration_bounds = array<i64: 1>, scalar_prefetch = 0 : i64, scratch_operands = 0 : i64, tpu.core_type = #tpu.core_type<tc>, window_params = [{transform_indices = @transform_0, window_bounds = array<i64: 2, 64>}, {pipeline_mode = #tpu.pipeline_mode<synchronous>, transform_indices = @transform_1, window_bounds = array<i64: 16, 128>}, {pipeline_mode = #tpu.pipeline_mode<synchronous>, transform_indices = @transform_2, window_bounds = array<i64: 1, 128>}, {pipeline_mode = #tpu.pipeline_mode<synchronous>, transform_indices = @transform_3, window_bounds = array<i64: 128, 128>}, {pipeline_mode = #tpu.pipeline_mode<synchronous>, transform_indices = @transform_4, window_bounds = array<i64: 1, 128>}, {pipeline_mode = #tpu.pipeline_mode<synchronous>, transform_indices = @transform_5, window_bounds = array<i64: 128, 128>}, {pipeline_mode = #tpu.pipeline_mode<synchronous>, transform_indices = @transform_6, window_bounds = array<i64: 1, 128>}, {transform_indices = @transform_7, window_bounds = array<i64: 2, 128>}]} {
    %c0 = arith.constant 0 : index
    %c0_0 = arith.constant 0 : index
    %0 = vector.load %arg2[%c0, %c0_0] : memref<16x128xf32, #tpu.memory_space<vmem>>, vector<16x128xf32>
    %c0_1 = arith.constant 0 : index
    %c0_2 = arith.constant 0 : index
    %1 = vector.load %arg4[%c0_1, %c0_2] : memref<128x128xf32, #tpu.memory_space<vmem>>, vector<128x128xf32>
    %c0_3 = arith.constant 0 : index
    %c0_4 = arith.constant 0 : index
    %2 = vector.load %arg6[%c0_3, %c0_4] : memref<128x128xf32, #tpu.memory_space<vmem>>, vector<128x128xf32>
    %c0_5 = arith.constant 0 : index
    %c0_6 = arith.constant 0 : index
    %3 = vector.load %arg3[%c0_5, %c0_6] : memref<1x128xf32, #tpu.memory_space<vmem>>, vector<1x128xf32>
    %c0_7 = arith.constant 0 : index
    %c0_8 = arith.constant 0 : index
    %4 = vector.load %arg5[%c0_7, %c0_8] : memref<1x128xf32, #tpu.memory_space<vmem>>, vector<1x128xf32>
    %c0_9 = arith.constant 0 : index
    %c0_10 = arith.constant 0 : index
    %5 = vector.load %arg7[%c0_9, %c0_10] : memref<1x128xf32, #tpu.memory_space<vmem>>, vector<1x128xf32>
    %c0_11 = arith.constant 0 : index
    %c0_12 = arith.constant 0 : index
    %6 = vector.load %arg1[%c0_11, %c0_12] : memref<2x64xf32, #tpu.memory_space<vmem>>, vector<2x64xf32>
    %7 = vector.extract_strided_slice %6 {offsets = [0, 0], sizes = [2, 16], strides = [1, 1]} : vector<2x64xf32> to vector<2x16xf32>
    %cst = arith.constant dense<0.000000e+00> : vector<2x128xf32>
    %8 = tpu.matmul %7, %0, %cst {dimension_numbers = #tpu.dot_dimension_numbers<[1], [0], [0], [1], [0, 0, 1, 1], [], []>, precision = #tpu.contract_precision<fp32>} : vector<2x16xf32>, vector<16x128xf32>, vector<2x128xf32> -> vector<2x128xf32>
    %9 = vector.broadcast %3 : vector<1x128xf32> to vector<2x128xf32>
    %10 = arith.addf %8, %9 : vector<2x128xf32>
    %cst_13 = arith.constant 0.000000e+00 : f32
    %11 = vector.broadcast %cst_13 : f32 to vector<2x128xf32>
    %12 = arith.maximumf %10, %11 : vector<2x128xf32>
    %cst_14 = arith.constant dense<0.000000e+00> : vector<2x128xf32>
    %13 = tpu.matmul %12, %1, %cst_14 {dimension_numbers = #tpu.dot_dimension_numbers<[1], [0], [0], [1], [0, 0, 1, 1], [], []>, precision = #tpu.contract_precision<fp32>} : vector<2x128xf32>, vector<128x128xf32>, vector<2x128xf32> -> vector<2x128xf32>
    %14 = vector.broadcast %4 : vector<1x128xf32> to vector<2x128xf32>
    %15 = arith.addf %13, %14 : vector<2x128xf32>
    %cst_15 = arith.constant 0.000000e+00 : f32
    %16 = vector.broadcast %cst_15 : f32 to vector<2x128xf32>
    %17 = arith.maximumf %15, %16 : vector<2x128xf32>
    %18 = vector.extract_strided_slice %6 {offsets = [0, 16], sizes = [2, 16], strides = [1, 1]} : vector<2x64xf32> to vector<2x16xf32>
    %cst_16 = arith.constant dense<0.000000e+00> : vector<2x128xf32>
    %19 = tpu.matmul %18, %0, %cst_16 {dimension_numbers = #tpu.dot_dimension_numbers<[1], [0], [0], [1], [0, 0, 1, 1], [], []>, precision = #tpu.contract_precision<fp32>} : vector<2x16xf32>, vector<16x128xf32>, vector<2x128xf32> -> vector<2x128xf32>
    %20 = vector.broadcast %3 : vector<1x128xf32> to vector<2x128xf32>
    %21 = arith.addf %19, %20 : vector<2x128xf32>
    %cst_17 = arith.constant 0.000000e+00 : f32
    %22 = vector.broadcast %cst_17 : f32 to vector<2x128xf32>
    %23 = arith.maximumf %21, %22 : vector<2x128xf32>
    %cst_18 = arith.constant dense<0.000000e+00> : vector<2x128xf32>
    %24 = tpu.matmul %23, %1, %cst_18 {dimension_numbers = #tpu.dot_dimension_numbers<[1], [0], [0], [1], [0, 0, 1, 1], [], []>, precision = #tpu.contract_precision<fp32>} : vector<2x128xf32>, vector<128x128xf32>, vector<2x128xf32> -> vector<2x128xf32>
    %25 = vector.broadcast %4 : vector<1x128xf32> to vector<2x128xf32>
    %26 = arith.addf %24, %25 : vector<2x128xf32>
    %cst_19 = arith.constant 0.000000e+00 : f32
    %27 = vector.broadcast %cst_19 : f32 to vector<2x128xf32>
    %28 = arith.maximumf %26, %27 : vector<2x128xf32>
    %29 = arith.addf %17, %28 : vector<2x128xf32>
    %30 = vector.extract_strided_slice %6 {offsets = [0, 32], sizes = [2, 16], strides = [1, 1]} : vector<2x64xf32> to vector<2x16xf32>
    %cst_20 = arith.constant dense<0.000000e+00> : vector<2x128xf32>
    %31 = tpu.matmul %30, %0, %cst_20 {dimension_numbers = #tpu.dot_dimension_numbers<[1], [0], [0], [1], [0, 0, 1, 1], [], []>, precision = #tpu.contract_precision<fp32>} : vector<2x16xf32>, vector<16x128xf32>, vector<2x128xf32> -> vector<2x128xf32>
    %32 = vector.broadcast %3 : vector<1x128xf32> to vector<2x128xf32>
    %33 = arith.addf %31, %32 : vector<2x128xf32>
    %cst_21 = arith.constant 0.000000e+00 : f32
    %34 = vector.broadcast %cst_21 : f32 to vector<2x128xf32>
    %35 = arith.maximumf %33, %34 : vector<2x128xf32>
    %cst_22 = arith.constant dense<0.000000e+00> : vector<2x128xf32>
    %36 = tpu.matmul %35, %1, %cst_22 {dimension_numbers = #tpu.dot_dimension_numbers<[1], [0], [0], [1], [0, 0, 1, 1], [], []>, precision = #tpu.contract_precision<fp32>} : vector<2x128xf32>, vector<128x128xf32>, vector<2x128xf32> -> vector<2x128xf32>
    %37 = vector.broadcast %4 : vector<1x128xf32> to vector<2x128xf32>
    %38 = arith.addf %36, %37 : vector<2x128xf32>
    %cst_23 = arith.constant 0.000000e+00 : f32
    %39 = vector.broadcast %cst_23 : f32 to vector<2x128xf32>
    %40 = arith.maximumf %38, %39 : vector<2x128xf32>
    %41 = arith.addf %29, %40 : vector<2x128xf32>
    %42 = vector.extract_strided_slice %6 {offsets = [0, 48], sizes = [2, 16], strides = [1, 1]} : vector<2x64xf32> to vector<2x16xf32>
    %cst_24 = arith.constant dense<0.000000e+00> : vector<2x128xf32>
    %43 = tpu.matmul %42, %0, %cst_24 {dimension_numbers = #tpu.dot_dimension_numbers<[1], [0], [0], [1], [0, 0, 1, 1], [], []>, precision = #tpu.contract_precision<fp32>} : vector<2x16xf32>, vector<16x128xf32>, vector<2x128xf32> -> vector<2x128xf32>
    %44 = vector.broadcast %3 : vector<1x128xf32> to vector<2x128xf32>
    %45 = arith.addf %43, %44 : vector<2x128xf32>
    %cst_25 = arith.constant 0.000000e+00 : f32
    %46 = vector.broadcast %cst_25 : f32 to vector<2x128xf32>
    %47 = arith.maximumf %45, %46 : vector<2x128xf32>
    %cst_26 = arith.constant dense<0.000000e+00> : vector<2x128xf32>
    %48 = tpu.matmul %47, %1, %cst_26 {dimension_numbers = #tpu.dot_dimension_numbers<[1], [0], [0], [1], [0, 0, 1, 1], [], []>, precision = #tpu.contract_precision<fp32>} : vector<2x128xf32>, vector<128x128xf32>, vector<2x128xf32> -> vector<2x128xf32>
    %49 = vector.broadcast %4 : vector<1x128xf32> to vector<2x128xf32>
    %50 = arith.addf %48, %49 : vector<2x128xf32>
    %cst_27 = arith.constant 0.000000e+00 : f32
    %51 = vector.broadcast %cst_27 : f32 to vector<2x128xf32>
    %52 = arith.maximumf %50, %51 : vector<2x128xf32>
    %53 = arith.addf %41, %52 : vector<2x128xf32>
    %cst_28 = arith.constant 2.500000e-01 : f32
    %54 = vector.broadcast %cst_28 : f32 to vector<2x128xf32>
    %55 = arith.mulf %53, %54 : vector<2x128xf32>
    %cst_29 = arith.constant dense<0.000000e+00> : vector<2x128xf32>
    %56 = tpu.matmul %55, %2, %cst_29 {dimension_numbers = #tpu.dot_dimension_numbers<[1], [0], [0], [1], [0, 0, 1, 1], [], []>, precision = #tpu.contract_precision<fp32>} : vector<2x128xf32>, vector<128x128xf32>, vector<2x128xf32> -> vector<2x128xf32>
    %57 = vector.broadcast %5 : vector<1x128xf32> to vector<2x128xf32>
    %58 = arith.addf %56, %57 : vector<2x128xf32>
    %c0_30 = arith.constant 0 : index
    %c0_31 = arith.constant 0 : index
    %59 = vector.load %arg8[%c0_30, %c0_31] : memref<2x128xf32, #tpu.memory_space<vmem>>, vector<2x128xf32>
    tpu.vector_store %arg8[%c0_30, %c0_31], %58 {strides = array<i32>} : memref<2x128xf32, #tpu.memory_space<vmem>>, vector<2x128xf32>,
    return
  }
  func.func @transform_0(%arg0: i32) -> (i32, i32) {
    %c0_i32 = arith.constant 0 : i32
    %c0_i32_0 = arith.constant 0 : i32
    return %arg0, %c0_i32 : i32, i32
  }
  func.func @transform_1(%arg0: i32) -> (i32, i32) {
    %c0_i32 = arith.constant 0 : i32
    %c0_i32_0 = arith.constant 0 : i32
    %c0_i32_1 = arith.constant 0 : i32
    return %c0_i32, %c0_i32_0 : i32, i32
  }
  func.func @transform_2(%arg0: i32) -> (i32, i32) {
    %c0_i32 = arith.constant 0 : i32
    %c0_i32_0 = arith.constant 0 : i32
    %c0_i32_1 = arith.constant 0 : i32
    return %c0_i32, %c0_i32_0 : i32, i32
  }
  func.func @transform_3(%arg0: i32) -> (i32, i32) {
    %c0_i32 = arith.constant 0 : i32
    %c0_i32_0 = arith.constant 0 : i32
    %c0_i32_1 = arith.constant 0 : i32
    return %c0_i32, %c0_i32_0 : i32, i32
  }
  func.func @transform_4(%arg0: i32) -> (i32, i32) {
    %c0_i32 = arith.constant 0 : i32
    %c0_i32_0 = arith.constant 0 : i32
    %c0_i32_1 = arith.constant 0 : i32
    return %c0_i32, %c0_i32_0 : i32, i32
  }
  func.func @transform_5(%arg0: i32) -> (i32, i32) {
    %c0_i32 = arith.constant 0 : i32
    %c0_i32_0 = arith.constant 0 : i32
    %c0_i32_1 = arith.constant 0 : i32
    return %c0_i32, %c0_i32_0 : i32, i32
  }
  func.func @transform_6(%arg0: i32) -> (i32, i32) {
    %c0_i32 = arith.constant 0 : i32
    %c0_i32_0 = arith.constant 0 : i32
    %c0_i32_1 = arith.constant 0 : i32
    return %c0_i32, %c0_i32_0 : i32, i32
  }
  func.func @transform_7(%arg0: i32) -> (i32, i32) {
    %c0_i32 = arith.constant 0 : i32
    %c0_i32_0 = arith.constant 0 : i32
    return %arg0, %c0_i32 : i32, i32
  }
}

</mosaic_0001>

<llo_original>
// kernel: tpu_custom_call.1
$region0: #{tpu_custom_call.1}
  #allocation0 [shape = 'u32[]', space=smem, size = 0x4, offset = 0x4, fixed_abs, tag = 'smem constant byte address 0x4 - core index']
  #allocation1 [shape = 'u32[72,128]{1,0:T(1,128)}', space=vmem, size = 0x9000, scoped, tag = 'internal scratch']
  %s0 = inlined_call_operand.hbm [shape: f32[2,64], index: 0, kind: input, shape index: {}]
  %s1 = inlined_call_operand.hbm [shape: f32[16,128], index: 1, kind: input, shape index: {}]
  %s2 = inlined_call_operand.vmem [shape: f32[1,128], index: 2, kind: input, shape index: {}]
  %s3 = inlined_call_operand.hbm [shape: f32[128,128], index: 3, kind: input, shape index: {}]
  %s4 = inlined_call_operand.vmem [shape: f32[1,128], index: 4, kind: input, shape index: {}]
  %s5 = inlined_call_operand.hbm [shape: f32[128,128], index: 5, kind: input, shape index: {}]
  %s6 = inlined_call_operand.vmem [shape: f32[1,128], index: 6, kind: input, shape index: {}]
  %s7 = inlined_call_operand.hbm [shape: f32[2,128], index: 7, kind: output, shape index: {}]
  %s8 = sld [smem:[#allocation0]]
  $region54: #{tpu_custom_call.1} parent=0
    _
  %s10 = ssub.s32 1, %s8
  %s11 = scalar_select 0, %s10, %s8
  $region1: #{tpu_custom_call.1} parent=0
    #allocation2 [shape = 'u8[1024]{0}', space=vmem, size = 0x400, scoped, tag = 'input window, operand 0, single buffered']
    #allocation3 [shape = 's32[1]{0}', space=sflag, size = 0x4, scoped, tag = 'scoped memory for tpu_custom_call.1']
    #allocation4 [shape = 's32[1]{0}', space=sflag, size = 0x4, scoped, tag = 'scoped memory for tpu_custom_call.1']
    #allocation5 [shape = 'u8[8192]{0}', space=vmem, size = 0x2000, scoped, tag = 'input window, operand 1, single buffered']
    #allocation6 [shape = 's32[1]{0}', space=sflag, size = 0x4, scoped, tag = 'scoped memory for tpu_custom_call.1']
    #allocation7 [shape = 'u8[65536]{0}', space=vmem, size = 0x10000, scoped, tag = 'input window, operand 3, single buffered']
    #allocation8 [shape = 'u8[65536]{0}', space=vmem, size = 0x10000, scoped, tag = 'input window, operand 5, single buffered']
    #allocation9 [shape = 's32[1]{0}', space=sflag, size = 0x4, scoped, tag = 'scoped memory for tpu_custom_call.1']
    #allocation10 [shape = 'u8[1024]{0}', space=vmem, size = 0x400, scoped, tag = 'output window, operand 0, single buffered']
    %12 = vsyncpa [#allocation3], 0
    %13 = vsyncpa [#allocation6], 0
    %14 = vsyncpa [#allocation9], 0
    %15 = vsyncpa [#allocation4], 0
    // Predicated region
    $region2: #{tpu_custom_call.1} parent=1 // pred_check
      _
    $region3: #{tpu_custom_call.1} parent=1 // pred_check_branch
      %17 = sbr.rel (0) target = $region5
    $region4: #{tpu_custom_call.1} parent=1 // pred_region
      %19 = vsyncadd [#allocation3], 0
      %s21 = sshll.u32 %s0, 4
      %s22 = int_to_ptr.hbm [resolvable:$true] %s21
      %s23 = sshll.u32 [#allocation2], 4
      %s24 = int_to_ptr.vmem [resolvable:$true] %s23
      %26 = dma.hbm_to_vmem [thread:$0]  %s22, 32, %s24, [#allocation3]
    $region5: #{tpu_custom_call.1} parent=1 // pred_fallthru
      _
    // Predicated region
    $region6: #{tpu_custom_call.1} parent=1 // pred_check
      _
    $region7: #{tpu_custom_call.1} parent=1 // pred_check_branch
      %28 = sbr.rel (0) target = $region9
    $region8: #{tpu_custom_call.1} parent=1 // pred_region
      %30 = vsyncadd [#allocation6], 0
      %s31 = sshll.u32 %s1, 4
      %s32 = int_to_ptr.hbm [resolvable:$true] %s31
      %s33 = sshll.u32 [#allocation5], 4
      %s34 = int_to_ptr.vmem [resolvable:$true] %s33
      %39 = dma.hbm_to_vmem [thread:$0]  %s32, 256, %s34, [#allocation6], 128, 128, 8
    $region9: #{tpu_custom_call.1} parent=1 // pred_fallthru
      _
    // Predicated region
    $region10: #{tpu_custom_call.1} parent=1 // pred_check
      _
    $region11: #{tpu_custom_call.1} parent=1 // pred_check_branch
      %41 = sbr.rel (0) target = $region13
    $region12: #{tpu_custom_call.1} parent=1 // pred_region
      _
    $region13: #{tpu_custom_call.1} parent=1 // pred_fallthru
      _
    // Predicated region
    $region14: #{tpu_custom_call.1} parent=1 // pred_check
      _
    $region15: #{tpu_custom_call.1} parent=1 // pred_check_branch
      %43 = sbr.rel (0) target = $region17
    $region16: #{tpu_custom_call.1} parent=1 // pred_region
      %45 = vsyncadd [#allocation6], 0
      %s46 = sshll.u32 %s3, 4
      %s47 = int_to_ptr.hbm [resolvable:$true] %s46
      %s48 = sshll.u32 [#allocation7], 4
      %s49 = int_to_ptr.vmem [resolvable:$true] %s48
      %54 = dma.hbm_to_vmem [thread:$0]  %s47, 2048, %s49, [#allocation6], 128, 128, 8
    $region17: #{tpu_custom_call.1} parent=1 // pred_fallthru
      _
    // Predicated region
    $region18: #{tpu_custom_call.1} parent=1 // pred_check
      _
    $region19: #{tpu_custom_call.1} parent=1 // pred_check_branch
      %56 = sbr.rel (0) target = $region21
    $region20: #{tpu_custom_call.1} parent=1 // pred_region
      _
    $region21: #{tpu_custom_call.1} parent=1 // pred_fallthru
      _
    // Predicated region
    $region22: #{tpu_custom_call.1} parent=1 // pred_check
      _
    $region23: #{tpu_custom_call.1} parent=1 // pred_check_branch
      %58 = sbr.rel (0) target = $region25
    $region24: #{tpu_custom_call.1} parent=1 // pred_region
      %60 = vsyncadd [#allocation9], 0
      %s61 = sshll.u32 %s5, 4
      %s62 = int_to_ptr.hbm [resolvable:$true] %s61
      %s63 = sshll.u32 [#allocation8], 4
      %s64 = int_to_ptr.vmem [resolvable:$true] %s63
      %69 = dma.hbm_to_vmem [thread:$0]  %s62, 2048, %s64, [#allocation9], 128, 128, 8
    $region25: #{tpu_custom_call.1} parent=1 // pred_fallthru
      _
    // Predicated region
    $region26: #{tpu_custom_call.1} parent=1 // pred_check
      _
    $region27: #{tpu_custom_call.1} parent=1 // pred_check_branch
      %71 = sbr.rel (0) target = $region29
    $region28: #{tpu_custom_call.1} parent=1 // pred_region
      _
    $region29: #{tpu_custom_call.1} parent=1 // pred_fallthru
      _
    // Predicated region
    $region30: #{tpu_custom_call.1} parent=1 // pred_check
      _
    $region31: #{tpu_custom_call.1} parent=1 // pred_check_branch
      %73 = sbr.rel (0) target = $region33
    $region32: #{tpu_custom_call.1} parent=1 // pred_region
      %75 = dma.done [#allocation3], 32
    $region33: #{tpu_custom_call.1} parent=1 // pred_fallthru
      _
    // Predicated region
    $region34: #{tpu_custom_call.1} parent=1 // pred_check
      _
    $region35: #{tpu_custom_call.1} parent=1 // pred_check_branch
      %77 = sbr.rel (0) target = $region37
    $region36: #{tpu_custom_call.1} parent=1 // pred_region
      %79 = dma.done [#allocation6], 256
    $region37: #{tpu_custom_call.1} parent=1 // pred_fallthru
      _
    // Predicated region
    $region38: #{tpu_custom_call.1} parent=1 // pred_check
      _
    $region39: #{tpu_custom_call.1} parent=1 // pred_check_branch
      %81 = sbr.rel (0) target = $region41
    $region40: #{tpu_custom_call.1} parent=1 // pred_region
      %83 = dma.done [#allocation6], 2048
    $region41: #{tpu_custom_call.1} parent=1 // pred_fallthru
      _
    // Predicated region
    $region42: #{tpu_custom_call.1} parent=1 // pred_check
      _
    $region43: #{tpu_custom_call.1} parent=1 // pred_check_branch
      %85 = sbr.rel (0) target = $region45
    $region44: #{tpu_custom_call.1} parent=1 // pred_region
      %87 = dma.done [#allocation9], 2048
    $region45: #{tpu_custom_call.1} parent=1 // pred_fallthru
      _
    %v88 = vld [vmem:[#allocation5] sm:$0xff]
    %v89 = vld [vmem:[#allocation5 + $0x8] sm:$0xff]
    %v90 = vld [vmem:[#allocation7] sm:$0xff]
    %v91 = vld [vmem:[#allocation7 + $0x8] sm:$0xff]
    %v92 = vld [vmem:[#allocation7 + $0x10] sm:$0xff]
    %v93 = vld [vmem:[#allocation7 + $0x18] sm:$0xff]
    %v94 = vld [vmem:[#allocation7 + $0x20] sm:$0xff]
    %v95 = vld [vmem:[#allocation7 + $0x28] sm:$0xff]
    %v96 = vld [vmem:[#allocation7 + $0x30] sm:$0xff]
    %v97 = vld [vmem:[#allocation7 + $0x38] sm:$0xff]
    %v98 = vld [vmem:[#allocation7 + $0x40] sm:$0xff]
    %v99 = vld [vmem:[#allocation7 + $0x48] sm:$0xff]
    %v100 = vld [vmem:[#allocation7 + $0x50] sm:$0xff]
    %v101 = vld [vmem:[#allocation7 + $0x58] sm:$0xff]
    %v102 = vld [vmem:[#allocation7 + $0x60] sm:$0xff]
    %v103 = vld [vmem:[#allocation7 + $0x68] sm:$0xff]
    %v104 = vld [vmem:[#allocation7 + $0x70] sm:$0xff]
    %v105 = vld [vmem:[#allocation7 + $0x78] sm:$0xff]
    %v106 = vld [vmem:[#allocation8] sm:$0xff]
    %v107 = vld [vmem:[#allocation8 + $0x8] sm:$0xff]
    %v108 = vld [vmem:[#allocation8 + $0x10] sm:$0xff]
    %v109 = vld [vmem:[#allocation8 + $0x18] sm:$0xff]
    %v110 = vld [vmem:[#allocation8 + $0x20] sm:$0xff]
    %v111 = vld [vmem:[#allocation8 + $0x28] sm:$0xff]
    %v112 = vld [vmem:[#allocation8 + $0x30] sm:$0xff]
    %v113 = vld [vmem:[#allocation8 + $0x38] sm:$0xff]
    %v114 = vld [vmem:[#allocation8 + $0x40] sm:$0xff]
    %v115 = vld [vmem:[#allocation8 + $0x48] sm:$0xff]
    %v116 = vld [vmem:[#allocation8 + $0x50] sm:$0xff]
    %v117 = vld [vmem:[#allocation8 + $0x58] sm:$0xff]
    %v118 = vld [vmem:[#allocation8 + $0x60] sm:$0xff]
    %v119 = vld [vmem:[#allocation8 + $0x68] sm:$0xff]
    %v120 = vld [vmem:[#allocation8 + $0x70] sm:$0xff]
    %v121 = vld [vmem:[#allocation8 + $0x78] sm:$0xff]
    %v122 = vld [vmem:[%s2] sm:$0x1]
    %v123 = vld [vmem:[%s4] sm:$0x1]
    %v124 = vld [vmem:[%s6] sm:$0x1]
    %v125 = vld [vmem:[#allocation2] sm:$0x3]
    %v127 = vperm.slane %v122, 0
    %vm129 = vcmask 130048
    %v131 = vsel %vm129, %v125, 0
    %133 = vmatpush.msra.mxu0 0.0
    %134 = vmatpush.msra.mxu0 0.0
    %135 = vmatpush.msra.mxu0 0.0
    %136 = vmatpush.msra.mxu0 0.0
    %137 = vmatpush.msra.mxu0 0.0
    %138 = vmatpush.msra.mxu0 0.0
    %139 = vmatpush.msra.mxu0 0.0
    %140 = vmatpush.msra.mxu0 0.0
    %141 = vmatpush.msra.mxu0 0.0
    %142 = vmatpush.msra.mxu0 0.0
    %143 = vmatpush.msra.mxu0 0.0
    %144 = vmatpush.msra.mxu0 0.0
    %145 = vmatpush.msra.mxu0 0.0
    %146 = vmatpush.msra.mxu0 0.0
    %v147 = vand.u32 %v89, 4294901760
    %148 = vmatpush.msra.mxu0 %v147
    %v149 = vand.u32 %v88, 4294901760
    %150 = vmatpush.msra.mxu0 %v149
    %v151 = vand.u32 %v131, 4294901760
    %v152 = vsub.f32 %v131, %v151
    %v153 = vand.u32 %v152, 4294901760
    %v154 = vsub.f32 %v152, %v153
    %v155 = vand.u32 %v154, 4294901760
    %156 = vmatmul.f32.gmra.mxu0 %v155
    %v157 = vpop.f32.mrf.mxu0
    %v158 = vadd.f32 %v127, %v157
    %159 = vdwg.mxu0
    %160 = vmatpush.msra.mxu0 0.0
    %161 = vmatpush.msra.mxu0 0.0
    %162 = vmatpush.msra.mxu0 0.0
    %163 = vmatpush.msra.mxu0 0.0
    %164 = vmatpush.msra.mxu0 0.0
    %165 = vmatpush.msra.mxu0 0.0
    %166 = vmatpush.msra.mxu0 0.0
    %167 = vmatpush.msra.mxu0 0.0
    %168 = vmatpush.msra.mxu0 0.0
    %169 = vmatpush.msra.mxu0 0.0
    %170 = vmatpush.msra.mxu0 0.0
    %171 = vmatpush.msra.mxu0 0.0
    %172 = vmatpush.msra.mxu0 0.0
    %173 = vmatpush.msra.mxu0 0.0
    %v174 = vand.u32 %v89, 4294901760
    %v175 = vsub.f32 %v89, %v174
    %v176 = vand.u32 %v175, 4294901760
    %v177 = vsub.f32 %v175, %v176
    %v178 = vand.u32 %v177, 4294901760
    %179 = vmatpush.msra.mxu0 %v178
    %v180 = vand.u32 %v88, 4294901760
    %v181 = vsub.f32 %v88, %v180
    %v182 = vand.u32 %v181, 4294901760
    %v183 = vsub.f32 %v181, %v182
    %v184 = vand.u32 %v183, 4294901760
    %185 = vmatpush.msra.mxu0 %v184
    %v186 = vand.u32 %v131, 4294901760
    %187 = vmatmul.f32.gmra.mxu0 %v186
    %v188 = vpop.f32.mrf.mxu0
    %v189 = vadd.f32 %v158, %v188
    %190 = vdwg.mxu0
    %191 = vmatpush.msra.mxu0 0.0
    %192 = vmatpush.msra.mxu0 0.0
    %193 = vmatpush.msra.mxu0 0.0
    %194 = vmatpush.msra.mxu0 0.0
    %195 = vmatpush.msra.mxu0 0.0
    %196 = vmatpush.msra.mxu0 0.0
    %197 = vmatpush.msra.mxu0 0.0
    %198 = vmatpush.msra.mxu0 0.0
    %199 = vmatpush.msra.mxu0 0.0
    %200 = vmatpush.msra.mxu0 0.0
    %201 = vmatpush.msra.mxu0 0.0
    %202 = vmatpush.msra.mxu0 0.0
    %203 = vmatpush.msra.mxu0 0.0
    %204 = vmatpush.msra.mxu0 0.0
    %v205 = vand.u32 %v89, 4294901760
    %v206 = vsub.f32 %v89, %v205
    %207 = vmatpush.msra.mxu0 %v206
    %v208 = vand.u32 %v88, 4294901760
    %v209 = vsub.f32 %v88, %v208
    %210 = vmatpush.msra.mxu0 %v209
    %v211 = vand.u32 %v131, 4294901760
    %v212 = vsub.f32 %v131, %v211
    %213 = vmatmul.f32.gmra.mxu0 %v212
    %v214 = vpop.f32.mrf.mxu0
    %v215 = vadd.f32 %v189, %v214
    %216 = vdwg.mxu0
    %217 = vmatpush.msra.mxu0 0.0
    %218 = vmatpush.msra.mxu0 0.0
    %219 = vmatpush.msra.mxu0 0.0
    %220 = vmatpush.msra.mxu0 0.0
    %221 = vmatpush.msra.mxu0 0.0
    %222 = vmatpush.msra.mxu0 0.0
    %223 = vmatpush.msra.mxu0 0.0
    %224 = vmatpush.msra.mxu0 0.0
    %225 = vmatpush.msra.mxu0 0.0
    %226 = vmatpush.msra.mxu0 0.0
    %227 = vmatpush.msra.mxu0 0.0
    %228 = vmatpush.msra.mxu0 0.0
    %229 = vmatpush.msra.mxu0 0.0
    %230 = vmatpush.msra.mxu0 0.0
    %v231 = vand.u32 %v89, 4294901760
    %232 = vmatpush.msra.mxu0 %v231
    %v233 = vand.u32 %v88, 4294901760
    %234 = vmatpush.msra.mxu0 %v233
    %v235 = vand.u32 %v131, 4294901760
    %v236 = vsub.f32 %v131, %v235
    %v237 = vand.u32 %v236, 4294901760
    %238 = vmatmul.f32.gmra.mxu0 %v237
    %v239 = vpop.f32.mrf.mxu0
    %v240 = vadd.f32 %v215, %v239
    %241 = vdwg.mxu0
    %242 = vmatpush.msra.mxu0 0.0
    %243 = vmatpush.msra.mxu0 0.0
    %244 = vmatpush.msra.mxu0 0.0
    %245 = vmatpush.msra.mxu0 0.0
    %246 = vmatpush.msra.mxu0 0.0
    %247 = vmatpush.msra.mxu0 0.0
    %248 = vmatpush.msra.mxu0 0.0
    %249 = vmatpush.msra.mxu0 0.0
    %250 = vmatpush.msra.mxu0 0.0
    %251 = vmatpush.msra.mxu0 0.0
    %252 = vmatpush.msra.mxu0 0.0
    %253 = vmatpush.msra.mxu0 0.0
    %254 = vmatpush.msra.mxu0 0.0
    %255 = vmatpush.msra.mxu0 0.0
    %v256 = vand.u32 %v89, 4294901760
    %v257 = vsub.f32 %v89, %v256
    %v258 = vand.u32 %v257, 4294901760
    %259 = vmatpush.msra.mxu0 %v258
    %v260 = vand.u32 %v88, 4294901760
    %v261 = vsub.f32 %v88, %v260
    %v262 = vand.u32 %v261, 4294901760
    %263 = vmatpush.msra.mxu0 %v262
    %v264 = vand.u32 %v131, 4294901760
    %265 = vmatmul.f32.gmra.mxu0 %v264
    %v266 = vpop.f32.mrf.mxu0
    %v267 = vadd.f32 %v240, %v266
    %268 = vdwg.mxu0
    %269 = vmatpush.msra.mxu0 0.0
    %270 = vmatpush.msra.mxu0 0.0
    %271 = vmatpush.msra.mxu0 0.0
    %272 = vmatpush.msra.mxu0 0.0
    %273 = vmatpush.msra.mxu0 0.0
    %274 = vmatpush.msra.mxu0 0.0
    %275 = vmatpush.msra.mxu0 0.0
    %276 = vmatpush.msra.mxu0 0.0
    %277 = vmatpush.msra.mxu0 0.0
    %278 = vmatpush.msra.mxu0 0.0
    %279 = vmatpush.msra.mxu0 0.0
    %280 = vmatpush.msra.mxu0 0.0
    %281 = vmatpush.msra.mxu0 0.0
    %282 = vmatpush.msra.mxu0 0.0
    %v283 = vand.u32 %v89, 4294901760
    %284 = vmatpush.msra.mxu0 %v283
    %v285 = vand.u32 %v88, 4294901760
    %286 = vmatpush.msra.mxu0 %v285
    %v287 = vand.u32 %v131, 4294901760
    %288 = vmatmul.f32.gmra.mxu0 %v287
    %v289 = vpop.f32.mrf.mxu0
    %v290 = vadd.f32 %v267, %v289
    %291 = vdwg.mxu0
    %v292 = vmax.f32 %v290, 0.0
    %v294 = vperm.slane %v123, 0
    %v296 = vand.u32 %v105, 4294901760
    %297 = vmatpush.msra.mxu0 %v296
    %v298 = vand.u32 %v104, 4294901760
    %299 = vmatpush.msra.mxu0 %v298
    %v300 = vand.u32 %v103, 4294901760
    %301 = vmatpush.msra.mxu0 %v300
    %v302 = vand.u32 %v102, 4294901760
    %303 = vmatpush.msra.mxu0 %v302
    %v304 = vand.u32 %v101, 4294901760
    %305 = vmatpush.msra.mxu0 %v304
    %v306 = vand.u32 %v100, 4294901760
    %307 = vmatpush.msra.mxu0 %v306
    %v308 = vand.u32 %v99, 4294901760
    %309 = vmatpush.msra.mxu0 %v308
    %v310 = vand.u32 %v98, 4294901760
    %311 = vmatpush.msra.mxu0 %v310
    %v312 = vand.u32 %v97, 4294901760
    %313 = vmatpush.msra.mxu0 %v312
    %v314 = vand.u32 %v96, 4294901760
    %315 = vmatpush.msra.mxu0 %v314
    %v316 = vand.u32 %v95, 4294901760
    %317 = vmatpush.msra.mxu0 %v316
    %v318 = vand.u32 %v94, 4294901760
    %319 = vmatpush.msra.mxu0 %v318
    %v320 = vand.u32 %v93, 4294901760
    %321 = vmatpush.msra.mxu0 %v320
    %v322 = vand.u32 %v92, 4294901760
    %323 = vmatpush.msra.mxu0 %v322
    %v324 = vand.u32 %v91, 4294901760
    %325 = vmatpush.msra.mxu0 %v324
    %v326 = vand.u32 %v90, 4294901760
    %327 = vmatpush.msra.mxu0 %v326
    %v328 = vand.u32 %v292, 4294901760
    %v329 = vsub.f32 %v292, %v328
    %v330 = vand.u32 %v329, 4294901760
    %v331 = vsub.f32 %v329, %v330
    %v332 = vand.u32 %v331, 4294901760
    %333 = vmatmul.f32.gmra.mxu0 %v332
    %v334 = vpop.f32.mrf.mxu0
    %v335 = vadd.f32 %v294, %v334
    %336 = vdwg.mxu0
    %v337 = vand.u32 %v105, 4294901760
    %v338 = vsub.f32 %v105, %v337
    %v339 = vand.u32 %v338, 4294901760
    %v340 = vsub.f32 %v338, %v339
    %v341 = vand.u32 %v340, 4294901760
    %342 = vmatpush.msra.mxu0 %v341
    %v343 = vand.u32 %v104, 4294901760
    %v344 = vsub.f32 %v104, %v343
    %v345 = vand.u32 %v344, 4294901760
    %v346 = vsub.f32 %v344, %v345
    %v347 = vand.u32 %v346, 4294901760
    %348 = vmatpush.msra.mxu0 %v347
    %v349 = vand.u32 %v103, 4294901760
    %v350 = vsub.f32 %v103, %v349
    %v351 = vand.u32 %v350, 4294901760
    %v352 = vsub.f32 %v350, %v351
    %v353 = vand.u32 %v352, 4294901760
    %354 = vmatpush.msra.mxu0 %v353
    %v355 = vand.u32 %v102, 4294901760
    %v356 = vsub.f32 %v102, %v355
    %v357 = vand.u32 %v356, 4294901760
    %v358 = vsub.f32 %v356, %v357
    %v359 = vand.u32 %v358, 4294901760
    %360 = vmatpush.msra.mxu0 %v359
    %v361 = vand.u32 %v101, 4294901760
    %v362 = vsub.f32 %v101, %v361
    %v363 = vand.u32 %v362, 4294901760
    %v364 = vsub.f32 %v362, %v363
    %v365 = vand.u32 %v364, 4294901760
    %366 = vmatpush.msra.mxu0 %v365
    %v367 = vand.u32 %v100, 4294901760
    %v368 = vsub.f32 %v100, %v367
    %v369 = vand.u32 %v368, 4294901760
    %v370 = vsub.f32 %v368, %v369
    %v371 = vand.u32 %v370, 4294901760
    %372 = vmatpush.msra.mxu0 %v371
    %v373 = vand.u32 %v99, 4294901760
    %v374 = vsub.f32 %v99, %v373
    %v375 = vand.u32 %v374, 4294901760
    %v376 = vsub.f32 %v374, %v375
    %v377 = vand.u32 %v376, 4294901760
    %378 = vmatpush.msra.mxu0 %v377
    %v379 = vand.u32 %v98, 4294901760
    %v380 = vsub.f32 %v98, %v379
    %v381 = vand.u32 %v380, 4294901760
    %v382 = vsub.f32 %v380, %v381
    %v383 = vand.u32 %v382, 4294901760
    %384 = vmatpush.msra.mxu0 %v383
    %v385 = vand.u32 %v97, 4294901760
    %v386 = vsub.f32 %v97, %v385
    %v387 = vand.u32 %v386, 4294901760
    %v388 = vsub.f32 %v386, %v387
    %v389 = vand.u32 %v388, 4294901760
    %390 = vmatpush.msra.mxu0 %v389
    %v391 = vand.u32 %v96, 4294901760
    %v392 = vsub.f32 %v96, %v391
    %v393 = vand.u32 %v392, 4294901760
    %v394 = vsub.f32 %v392, %v393
    %v395 = vand.u32 %v394, 4294901760
    %396 = vmatpush.msra.mxu0 %v395
    %v397 = vand.u32 %v95, 4294901760
    %v398 = vsub.f32 %v95, %v397
    %v399 = vand.u32 %v398, 4294901760
    %v400 = vsub.f32 %v398, %v399
    %v401 = vand.u32 %v400, 4294901760
    %402 = vmatpush.msra.mxu0 %v401
    %v403 = vand.u32 %v94, 4294901760
    %v404 = vsub.f32 %v94, %v403
    %v405 = vand.u32 %v404, 4294901760
    %v406 = vsub.f32 %v404, %v405
    %v407 = vand.u32 %v406, 4294901760
    %408 = vmatpush.msra.mxu0 %v407
    %v409 = vand.u32 %v93, 4294901760
    %v410 = vsub.f32 %v93, %v409
    %v411 = vand.u32 %v410, 4294901760
    %v412 = vsub.f32 %v410, %v411
    %v413 = vand.u32 %v412, 4294901760
    %414 = vmatpush.msra.mxu0 %v413
    %v415 = vand.u32 %v92, 4294901760
    %v416 = vsub.f32 %v92, %v415
    %v417 = vand.u32 %v416, 4294901760
    %v418 = vsub.f32 %v416, %v417
    %v419 = vand.u32 %v418, 4294901760
    %420 = vmatpush.msra.mxu0 %v419
    %v421 = vand.u32 %v91, 4294901760
    %v422 = vsub.f32 %v91, %v421
    %v423 = vand.u32 %v422, 4294901760
    %v424 = vsub.f32 %v422, %v423
    %v425 = vand.u32 %v424, 4294901760
    %426 = vmatpush.msra.mxu0 %v425
    %v427 = vand.u32 %v90, 4294901760
    %v428 = vsub.f32 %v90, %v427
    %v429 = vand.u32 %v428, 4294901760
    %v430 = vsub.f32 %v428, %v429
    %v431 = vand.u32 %v430, 4294901760
    %432 = vmatpush.msra.mxu0 %v431
    %v433 = vand.u32 %v292, 4294901760
    %434 = vmatmul.f32.gmra.mxu0 %v433
    %v435 = vpop.f32.mrf.mxu0
    %v436 = vadd.f32 %v335, %v435
    %437 = vdwg.mxu0
    %v438 = vand.u32 %v105, 4294901760
    %v439 = vsub.f32 %v105, %v438
    %440 = vmatpush.msra.mxu0 %v439
    %v441 = vand.u32 %v104, 4294901760
    %v442 = vsub.f32 %v104, %v441
    %443 = vmatpush.msra.mxu0 %v442
    %v444 = vand.u32 %v103, 4294901760
    %v445 = vsub.f32 %v103, %v444
    %446 = vmatpush.msra.mxu0 %v445
    %v447 = vand.u32 %v102, 4294901760
    %v448 = vsub.f32 %v102, %v447
    %449 = vmatpush.msra.mxu0 %v448
    %v450 = vand.u32 %v101, 4294901760
    %v451 = vsub.f32 %v101, %v450
    %452 = vmatpush.msra.mxu0 %v451
    %v453 = vand.u32 %v100, 4294901760
    %v454 = vsub.f32 %v100, %v453
    %455 = vmatpush.msra.mxu0 %v454
    %v456 = vand.u32 %v99, 4294901760
    %v457 = vsub.f32 %v99, %v456
    %458 = vmatpush.msra.mxu0 %v457
    %v459 = vand.u32 %v98, 4294901760
    %v460 = vsub.f32 %v98, %v459
    %461 = vmatpush.msra.mxu0 %v460
    %v462 = vand.u32 %v97, 4294901760
    %v463 = vsub.f32 %v97, %v462
    %464 = vmatpush.msra.mxu0 %v463
    %v465 = vand.u32 %v96, 4294901760
    %v466 = vsub.f32 %v96, %v465
    %467 = vmatpush.msra.mxu0 %v466
    %v468 = vand.u32 %v95, 4294901760
    %v469 = vsub.f32 %v95, %v468
    %470 = vmatpush.msra.mxu0 %v469
    %v471 = vand.u32 %v94, 4294901760
    %v472 = vsub.f32 %v94, %v471
    %473 = vmatpush.msra.mxu0 %v472
    %v474 = vand.u32 %v93, 4294901760
    %v475 = vsub.f32 %v93, %v474
    %476 = vmatpush.msra.mxu0 %v475
    %v477 = vand.u32 %v92, 4294901760
    %v478 = vsub.f32 %v92, %v477
    %479 = vmatpush.msra.mxu0 %v478
    %v480 = vand.u32 %v91, 4294901760
    %v481 = vsub.f32 %v91, %v480
    %482 = vmatpush.msra.mxu0 %v481
    %v483 = vand.u32 %v90, 4294901760
    %v484 = vsub.f32 %v90, %v483
    %485 = vmatpush.msra.mxu0 %v484
    %v486 = vand.u32 %v292, 4294901760
    %v487 = vsub.f32 %v292, %v486
    %488 = vmatmul.f32.gmra.mxu0 %v487
    %v489 = vpop.f32.mrf.mxu0
    %v490 = vadd.f32 %v436, %v489
    %491 = vdwg.mxu0
    %v492 = vand.u32 %v105, 4294901760
    %493 = vmatpush.msra.mxu0 %v492
    %v494 = vand.u32 %v104, 4294901760
    %495 = vmatpush.msra.mxu0 %v494
    %v496 = vand.u32 %v103, 4294901760
    %497 = vmatpush.msra.mxu0 %v496
    %v498 = vand.u32 %v102, 4294901760
    %499 = vmatpush.msra.mxu0 %v498
    %v500 = vand.u32 %v101, 4294901760
    %501 = vmatpush.msra.mxu0 %v500
    %v502 = vand.u32 %v100, 4294901760
    %503 = vmatpush.msra.mxu0 %v502
    %v504 = vand.u32 %v99, 4294901760
    %505 = vmatpush.msra.mxu0 %v504
    %v506 = vand.u32 %v98, 4294901760
    %507 = vmatpush.msra.mxu0 %v506
    %v508 = vand.u32 %v97, 4294901760
    %509 = vmatpush.msra.mxu0 %v508
    %v510 = vand.u32 %v96, 4294901760
    %511 = vmatpush.msra.mxu0 %v510
    %v512 = vand.u32 %v95, 4294901760
    %513 = vmatpush.msra.mxu0 %v512
    %v514 = vand.u32 %v94, 4294901760
    %515 = vmatpush.msra.mxu0 %v514
    %v516 = vand.u32 %v93, 4294901760
    %517 = vmatpush.msra.mxu0 %v516
    %v518 = vand.u32 %v92, 4294901760
    %519 = vmatpush.msra.mxu0 %v518
    %v520 = vand.u32 %v91, 4294901760
    %521 = vmatpush.msra.mxu0 %v520
    %v522 = vand.u32 %v90, 4294901760
    %523 = vmatpush.msra.mxu0 %v522
    %v524 = vand.u32 %v292, 4294901760
    %v525 = vsub.f32 %v292, %v524
    %v526 = vand.u32 %v525, 4294901760
    %527 = vmatmul.f32.gmra.mxu0 %v526
    %v528 = vpop.f32.mrf.mxu0
    %v529 = vadd.f32 %v490, %v528
    %530 = vdwg.mxu0
    %v531 = vand.u32 %v105, 4294901760
    %v532 = vsub.f32 %v105, %v531
    %v533 = vand.u32 %v532, 4294901760
    %534 = vmatpush.msra.mxu0 %v533
    %v535 = vand.u32 %v104, 4294901760
    %v536 = vsub.f32 %v104, %v535
    %v537 = vand.u32 %v536, 4294901760
    %538 = vmatpush.msra.mxu0 %v537
    %v539 = vand.u32 %v103, 4294901760
    %v540 = vsub.f32 %v103, %v539
    %v541 = vand.u32 %v540, 4294901760
    %542 = vmatpush.msra.mxu0 %v541
    %v543 = vand.u32 %v102, 4294901760
    %v544 = vsub.f32 %v102, %v543
    %v545 = vand.u32 %v544, 4294901760
    %546 = vmatpush.msra.mxu0 %v545
    %v547 = vand.u32 %v101, 4294901760
    %v548 = vsub.f32 %v101, %v547
    %v549 = vand.u32 %v548, 4294901760
    %550 = vmatpush.msra.mxu0 %v549
    %v551 = vand.u32 %v100, 4294901760
    %v552 = vsub.f32 %v100, %v551
    %v553 = vand.u32 %v552, 4294901760
    %554 = vmatpush.msra.mxu0 %v553
    %v555 = vand.u32 %v99, 4294901760
    %v556 = vsub.f32 %v99, %v555
    %v557 = vand.u32 %v556, 4294901760
    %558 = vmatpush.msra.mxu0 %v557
    %v559 = vand.u32 %v98, 4294901760
    %v560 = vsub.f32 %v98, %v559
    %v561 = vand.u32 %v560, 4294901760
    %562 = vmatpush.msra.mxu0 %v561
    %v563 = vand.u32 %v97, 4294901760
    %v564 = vsub.f32 %v97, %v563
    %v565 = vand.u32 %v564, 4294901760
    %566 = vmatpush.msra.mxu0 %v565
    %v567 = vand.u32 %v96, 4294901760
    %v568 = vsub.f32 %v96, %v567
    %v569 = vand.u32 %v568, 4294901760
    %570 = vmatpush.msra.mxu0 %v569
    %v571 = vand.u32 %v95, 4294901760
    %v572 = vsub.f32 %v95, %v571
    %v573 = vand.u32 %v572, 4294901760
    %574 = vmatpush.msra.mxu0 %v573
    %v575 = vand.u32 %v94, 4294901760
    %v576 = vsub.f32 %v94, %v575
    %v577 = vand.u32 %v576, 4294901760
    %578 = vmatpush.msra.mxu0 %v577
    %v579 = vand.u32 %v93, 4294901760
    %v580 = vsub.f32 %v93, %v579
    %v581 = vand.u32 %v580, 4294901760
    %582 = vmatpush.msra.mxu0 %v581
    %v583 = vand.u32 %v92, 4294901760
    %v584 = vsub.f32 %v92, %v583
    %v585 = vand.u32 %v584, 4294901760
    %586 = vmatpush.msra.mxu0 %v585
    %v587 = vand.u32 %v91, 4294901760
    %v588 = vsub.f32 %v91, %v587
    %v589 = vand.u32 %v588, 4294901760
    %590 = vmatpush.msra.mxu0 %v589
    %v591 = vand.u32 %v90, 4294901760
    %v592 = vsub.f32 %v90, %v591
    %v593 = vand.u32 %v592, 4294901760
    %594 = vmatpush.msra.mxu0 %v593
    %v595 = vand.u32 %v292, 4294901760
    %596 = vmatmul.f32.gmra.mxu0 %v595
    %v597 = vpop.f32.mrf.mxu0
    %v598 = vadd.f32 %v529, %v597
    %599 = vdwg.mxu0
    %v600 = vand.u32 %v105, 4294901760
    %601 = vmatpush.msra.mxu0 %v600
    %v602 = vand.u32 %v104, 4294901760
    %603 = vmatpush.msra.mxu0 %v602
    %v604 = vand.u32 %v103, 4294901760
    %605 = vmatpush.msra.mxu0 %v604
    %v606 = vand.u32 %v102, 4294901760
    %607 = vmatpush.msra.mxu0 %v606
    %v608 = vand.u32 %v101, 4294901760
    %609 = vmatpush.msra.mxu0 %v608
    %v610 = vand.u32 %v100, 4294901760
    %611 = vmatpush.msra.mxu0 %v610
    %v612 = vand.u32 %v99, 4294901760
    %613 = vmatpush.msra.mxu0 %v612
    %v614 = vand.u32 %v98, 4294901760
    %615 = vmatpush.msra.mxu0 %v614
    %v616 = vand.u32 %v97, 4294901760
    %617 = vmatpush.msra.mxu0 %v616
    %v618 = vand.u32 %v96, 4294901760
    %619 = vmatpush.msra.mxu0 %v618
    %v620 = vand.u32 %v95, 4294901760
    %621 = vmatpush.msra.mxu0 %v620
    %v622 = vand.u32 %v94, 4294901760
    %623 = vmatpush.msra.mxu0 %v622
    %v624 = vand.u32 %v93, 4294901760
    %625 = vmatpush.msra.mxu0 %v624
    %v626 = vand.u32 %v92, 4294901760
    %627 = vmatpush.msra.mxu0 %v626
    %v628 = vand.u32 %v91, 4294901760
    %629 = vmatpush.msra.mxu0 %v628
    %v630 = vand.u32 %v90, 4294901760
    %631 = vmatpush.msra.mxu0 %v630
    %v632 = vand.u32 %v292, 4294901760
    %633 = vmatmul.f32.gmra.mxu0 %v632
    %v634 = vpop.f32.mrf.mxu0
    %v635 = vadd.f32 %v598, %v634
    %636 = vdwg.mxu0
    %v637 = vmax.f32 %v635, 0.0
    %638 = vrot.lane.b32.xlu0 %v125, 112
    %v639 = vpop.permute.xlu0 %638
    %v640 = vsel %vm129, %v639, 0
    %642 = vmatpush.msra.mxu0 0.0
    %643 = vmatpush.msra.mxu0 0.0
    %644 = vmatpush.msra.mxu0 0.0
    %645 = vmatpush.msra.mxu0 0.0
    %646 = vmatpush.msra.mxu0 0.0
    %647 = vmatpush.msra.mxu0 0.0
    %648 = vmatpush.msra.mxu0 0.0
    %649 = vmatpush.msra.mxu0 0.0
    %650 = vmatpush.msra.mxu0 0.0
    %651 = vmatpush.msra.mxu0 0.0
    %652 = vmatpush.msra.mxu0 0.0
    %653 = vmatpush.msra.mxu0 0.0
    %654 = vmatpush.msra.mxu0 0.0
    %655 = vmatpush.msra.mxu0 0.0
    %v656 = vand.u32 %v89, 4294901760
    %657 = vmatpush.msra.mxu0 %v656
    %v658 = vand.u32 %v88, 4294901760
    %659 = vmatpush.msra.mxu0 %v658
    %v660 = vand.u32 %v640, 4294901760
    %v661 = vsub.f32 %v640, %v660
    %v662 = vand.u32 %v661, 4294901760
    %v663 = vsub.f32 %v661, %v662
    %v664 = vand.u32 %v663, 4294901760
    %665 = vmatmul.f32.gmra.mxu0 %v664
    %v666 = vpop.f32.mrf.mxu0
    %v667 = vadd.f32 %v127, %v666
    %668 = vdwg.mxu0
    %669 = vmatpush.msra.mxu0 0.0
    %670 = vmatpush.msra.mxu0 0.0
    %671 = vmatpush.msra.mxu0 0.0
    %672 = vmatpush.msra.mxu0 0.0
    %673 = vmatpush.msra.mxu0 0.0
    %674 = vmatpush.msra.mxu0 0.0
    %675 = vmatpush.msra.mxu0 0.0
    %676 = vmatpush.msra.mxu0 0.0
    %677 = vmatpush.msra.mxu0 0.0
    %678 = vmatpush.msra.mxu0 0.0
    %679 = vmatpush.msra.mxu0 0.0
    %680 = vmatpush.msra.mxu0 0.0
    %681 = vmatpush.msra.mxu0 0.0
    %682 = vmatpush.msra.mxu0 0.0
    %v683 = vand.u32 %v89, 4294901760
    %v684 = vsub.f32 %v89, %v683
    %v685 = vand.u32 %v684, 4294901760
    %v686 = vsub.f32 %v684, %v685
    %v687 = vand.u32 %v686, 4294901760
    %688 = vmatpush.msra.mxu0 %v687
    %v689 = vand.u32 %v88, 4294901760
    %v690 = vsub.f32 %v88, %v689
    %v691 = vand.u32 %v690, 4294901760
    %v692 = vsub.f32 %v690, %v691
    %v693 = vand.u32 %v692, 4294901760
    %694 = vmatpush.msra.mxu0 %v693
    %v695 = vand.u32 %v640, 4294901760
    %696 = vmatmul.f32.gmra.mxu0 %v695
    %v697 = vpop.f32.mrf.mxu0
    %v698 = vadd.f32 %v667, %v697
    %699 = vdwg.mxu0
    %700 = vmatpush.msra.mxu0 0.0
    %701 = vmatpush.msra.mxu0 0.0
    %702 = vmatpush.msra.mxu0 0.0
    %703 = vmatpush.msra.mxu0 0.0
    %704 = vmatpush.msra.mxu0 0.0
    %705 = vmatpush.msra.mxu0 0.0
    %706 = vmatpush.msra.mxu0 0.0
    %707 = vmatpush.msra.mxu0 0.0
    %708 = vmatpush.msra.mxu0 0.0
    %709 = vmatpush.msra.mxu0 0.0
    %710 = vmatpush.msra.mxu0 0.0
    %711 = vmatpush.msra.mxu0 0.0
    %712 = vmatpush.msra.mxu0 0.0
    %713 = vmatpush.msra.mxu0 0.0
    %v714 = vand.u32 %v89, 4294901760
    %v715 = vsub.f32 %v89, %v714
    %716 = vmatpush.msra.mxu0 %v715
    %v717 = vand.u32 %v88, 4294901760
    %v718 = vsub.f32 %v88, %v717
    %719 = vmatpush.msra.mxu0 %v718
    %v720 = vand.u32 %v640, 4294901760
    %v721 = vsub.f32 %v640, %v720
    %722 = vmatmul.f32.gmra.mxu0 %v721
    %v723 = vpop.f32.mrf.mxu0
    %v724 = vadd.f32 %v698, %v723
    %725 = vdwg.mxu0
    %726 = vmatpush.msra.mxu0 0.0
    %727 = vmatpush.msra.mxu0 0.0
    %728 = vmatpush.msra.mxu0 0.0
    %729 = vmatpush.msra.mxu0 0.0
    %730 = vmatpush.msra.mxu0 0.0
    %731 = vmatpush.msra.mxu0 0.0
    %732 = vmatpush.msra.mxu0 0.0
    %733 = vmatpush.msra.mxu0 0.0
    %734 = vmatpush.msra.mxu0 0.0
    %735 = vmatpush.msra.mxu0 0.0
    %736 = vmatpush.msra.mxu0 0.0
    %737 = vmatpush.msra.mxu0 0.0
    %738 = vmatpush.msra.mxu0 0.0
    %739 = vmatpush.msra.mxu0 0.0
    %v740 = vand.u32 %v89, 4294901760
    %741 = vmatpush.msra.mxu0 %v740
    %v742 = vand.u32 %v88, 4294901760
    %743 = vmatpush.msra.mxu0 %v742
    %v744 = vand.u32 %v640, 4294901760
    %v745 = vsub.f32 %v640, %v744
    %v746 = vand.u32 %v745, 4294901760
    %747 = vmatmul.f32.gmra.mxu0 %v746
    %v748 = vpop.f32.mrf.mxu0
    %v749 = vadd.f32 %v724, %v748
    %750 = vdwg.mxu0
    %751 = vmatpush.msra.mxu0 0.0
    %752 = vmatpush.msra.mxu0 0.0
    %753 = vmatpush.msra.mxu0 0.0
    %754 = vmatpush.msra.mxu0 0.0
    %755 = vmatpush.msra.mxu0 0.0
    %756 = vmatpush.msra.mxu0 0.0
    %757 = vmatpush.msra.mxu0 0.0
    %758 = vmatpush.msra.mxu0 0.0
    %759 = vmatpush.msra.mxu0 0.0
    %760 = vmatpush.msra.mxu0 0.0
    %761 = vmatpush.msra.mxu0 0.0
    %762 = vmatpush.msra.mxu0 0.0
    %763 = vmatpush.msra.mxu0 0.0
    %764 = vmatpush.msra.mxu0 0.0
    %v765 = vand.u32 %v89, 4294901760
    %v766 = vsub.f32 %v89, %v765
    %v767 = vand.u32 %v766, 4294901760
    %768 = vmatpush.msra.mxu0 %v767
    %v769 = vand.u32 %v88, 4294901760
    %v770 = vsub.f32 %v88, %v769
    %v771 = vand.u32 %v770, 4294901760
    %772 = vmatpush.msra.mxu0 %v771
    %v773 = vand.u32 %v640, 4294901760
    %774 = vmatmul.f32.gmra.mxu0 %v773
    %v775 = vpop.f32.mrf.mxu0
    %v776 = vadd.f32 %v749, %v775
    %777 = vdwg.mxu0
    %778 = vmatpush.msra.mxu0 0.0
    %779 = vmatpush.msra.mxu0 0.0
    %780 = vmatpush.msra.mxu0 0.0
    %781 = vmatpush.msra.mxu0 0.0
    %782 = vmatpush.msra.mxu0 0.0
    %783 = vmatpush.msra.mxu0 0.0
    %784 = vmatpush.msra.mxu0 0.0
    %785 = vmatpush.msra.mxu0 0.0
    %786 = vmatpush.msra.mxu0 0.0
    %787 = vmatpush.msra.mxu0 0.0
    %788 = vmatpush.msra.mxu0 0.0
    %789 = vmatpush.msra.mxu0 0.0
    %790 = vmatpush.msra.mxu0 0.0
    %791 = vmatpush.msra.mxu0 0.0
    %v792 = vand.u32 %v89, 4294901760
    %793 = vmatpush.msra.mxu0 %v792
    %v794 = vand.u32 %v88, 4294901760
    %795 = vmatpush.msra.mxu0 %v794
    %v796 = vand.u32 %v640, 4294901760
    %797 = vmatmul.f32.gmra.mxu0 %v796
    %v798 = vpop.f32.mrf.mxu0
    %v799 = vadd.f32 %v776, %v798
    %800 = vdwg.mxu0
    %v801 = vmax.f32 %v799, 0.0
    %v802 = vand.u32 %v105, 4294901760
    %803 = vmatpush.msra.mxu0 %v802
    %v804 = vand.u32 %v104, 4294901760
    %805 = vmatpush.msra.mxu0 %v804
    %v806 = vand.u32 %v103, 4294901760
    %807 = vmatpush.msra.mxu0 %v806
    %v808 = vand.u32 %v102, 4294901760
    %809 = vmatpush.msra.mxu0 %v808
    %v810 = vand.u32 %v101, 4294901760
    %811 = vmatpush.msra.mxu0 %v810
    %v812 = vand.u32 %v100, 4294901760
    %813 = vmatpush.msra.mxu0 %v812
    %v814 = vand.u32 %v99, 4294901760
    %815 = vmatpush.msra.mxu0 %v814
    %v816 = vand.u32 %v98, 4294901760
    %817 = vmatpush.msra.mxu0 %v816
    %v818 = vand.u32 %v97, 4294901760
    %819 = vmatpush.msra.mxu0 %v818
    %v820 = vand.u32 %v96, 4294901760
    %821 = vmatpush.msra.mxu0 %v820
    %v822 = vand.u32 %v95, 4294901760
    %823 = vmatpush.msra.mxu0 %v822
    %v824 = vand.u32 %v94, 4294901760
    %825 = vmatpush.msra.mxu0 %v824
    %v826 = vand.u32 %v93, 4294901760
    %827 = vmatpush.msra.mxu0 %v826
    %v828 = vand.u32 %v92, 4294901760
    %829 = vmatpush.msra.mxu0 %v828
    %v830 = vand.u32 %v91, 4294901760
    %831 = vmatpush.msra.mxu0 %v830
    %v832 = vand.u32 %v90, 4294901760
    %833 = vmatpush.msra.mxu0 %v832
    %v834 = vand.u32 %v801, 4294901760
    %v835 = vsub.f32 %v801, %v834
    %v836 = vand.u32 %v835, 4294901760
    %v837 = vsub.f32 %v835, %v836
    %v838 = vand.u32 %v837, 4294901760
    %839 = vmatmul.f32.gmra.mxu0 %v838
    %v840 = vpop.f32.mrf.mxu0
    %v841 = vadd.f32 %v294, %v840
    %842 = vdwg.mxu0
    %v843 = vand.u32 %v105, 4294901760
    %v844 = vsub.f32 %v105, %v843
    %v845 = vand.u32 %v844, 4294901760
    %v846 = vsub.f32 %v844, %v845
    %v847 = vand.u32 %v846, 4294901760
    %848 = vmatpush.msra.mxu0 %v847
    %v849 = vand.u32 %v104, 4294901760
    %v850 = vsub.f32 %v104, %v849
    %v851 = vand.u32 %v850, 4294901760
    %v852 = vsub.f32 %v850, %v851
    %v853 = vand.u32 %v852, 4294901760
    %854 = vmatpush.msra.mxu0 %v853
    %v855 = vand.u32 %v103, 4294901760
    %v856 = vsub.f32 %v103, %v855
    %v857 = vand.u32 %v856, 4294901760
    %v858 = vsub.f32 %v856, %v857
    %v859 = vand.u32 %v858, 4294901760
    %860 = vmatpush.msra.mxu0 %v859
    %v861 = vand.u32 %v102, 4294901760
    %v862 = vsub.f32 %v102, %v861
    %v863 = vand.u32 %v862, 4294901760
    %v864 = vsub.f32 %v862, %v863
    %v865 = vand.u32 %v864, 4294901760
    %866 = vmatpush.msra.mxu0 %v865
    %v867 = vand.u32 %v101, 4294901760
    %v868 = vsub.f32 %v101, %v867
    %v869 = vand.u32 %v868, 4294901760
    %v870 = vsub.f32 %v868, %v869
    %v871 = vand.u32 %v870, 4294901760
    %872 = vmatpush.msra.mxu0 %v871
    %v873 = vand.u32 %v100, 4294901760
    %v874 = vsub.f32 %v100, %v873
    %v875 = vand.u32 %v874, 4294901760
    %v876 = vsub.f32 %v874, %v875
    %v877 = vand.u32 %v876, 4294901760
    %878 = vmatpush.msra.mxu0 %v877
    %v879 = vand.u32 %v99, 4294901760
    %v880 = vsub.f32 %v99, %v879
    %v881 = vand.u32 %v880, 4294901760
    %v882 = vsub.f32 %v880, %v881
    %v883 = vand.u32 %v882, 4294901760
    %884 = vmatpush.msra.mxu0 %v883
    %v885 = vand.u32 %v98, 4294901760
    %v886 = vsub.f32 %v98, %v885
    %v887 = vand.u32 %v886, 4294901760
    %v888 = vsub.f32 %v886, %v887
    %v889 = vand.u32 %v888, 4294901760
    %890 = vmatpush.msra.mxu0 %v889
    %v891 = vand.u32 %v97, 4294901760
    %v892 = vsub.f32 %v97, %v891
    %v893 = vand.u32 %v892, 4294901760
    %v894 = vsub.f32 %v892, %v893
    %v895 = vand.u32 %v894, 4294901760
    %896 = vmatpush.msra.mxu0 %v895
    %v897 = vand.u32 %v96, 4294901760
    %v898 = vsub.f32 %v96, %v897
    %v899 = vand.u32 %v898, 4294901760
    %v900 = vsub.f32 %v898, %v899
    %v901 = vand.u32 %v900, 4294901760
    %902 = vmatpush.msra.mxu0 %v901
    %v903 = vand.u32 %v95, 4294901760
    %v904 = vsub.f32 %v95, %v903
    %v905 = vand.u32 %v904, 4294901760
    %v906 = vsub.f32 %v904, %v905
    %v907 = vand.u32 %v906, 4294901760
    %908 = vmatpush.msra.mxu0 %v907
    %v909 = vand.u32 %v94, 4294901760
    %v910 = vsub.f32 %v94, %v909
    %v911 = vand.u32 %v910, 4294901760
    %v912 = vsub.f32 %v910, %v911
    %v913 = vand.u32 %v912, 4294901760
    %914 = vmatpush.msra.mxu0 %v913
    %v915 = vand.u32 %v93, 4294901760
    %v916 = vsub.f32 %v93, %v915
    %v917 = vand.u32 %v916, 4294901760
    %v918 = vsub.f32 %v916, %v917
    %v919 = vand.u32 %v918, 4294901760
    %920 = vmatpush.msra.mxu0 %v919
    %v921 = vand.u32 %v92, 4294901760
    %v922 = vsub.f32 %v92, %v921
    %v923 = vand.u32 %v922, 4294901760
    %v924 = vsub.f32 %v922, %v923
    %v925 = vand.u32 %v924, 4294901760
    %926 = vmatpush.msra.mxu0 %v925
    %v927 = vand.u32 %v91, 4294901760
    %v928 = vsub.f32 %v91, %v927
    %v929 = vand.u32 %v928, 4294901760
    %v930 = vsub.f32 %v928, %v929
    %v931 = vand.u32 %v930, 4294901760
    %932 = vmatpush.msra.mxu0 %v931
    %v933 = vand.u32 %v90, 4294901760
    %v934 = vsub.f32 %v90, %v933
    %v935 = vand.u32 %v934, 4294901760
    %v936 = vsub.f32 %v934, %v935
    %v937 = vand.u32 %v936, 4294901760
    %938 = vmatpush.msra.mxu0 %v937
    %v939 = vand.u32 %v801, 4294901760
    %940 = vmatmul.f32.gmra.mxu0 %v939
    %v941 = vpop.f32.mrf.mxu0
    %v942 = vadd.f32 %v841, %v941
    %943 = vdwg.mxu0
    %v944 = vand.u32 %v105, 4294901760
    %v945 = vsub.f32 %v105, %v944
    %946 = vmatpush.msra.mxu0 %v945
    %v947 = vand.u32 %v104, 4294901760
    %v948 = vsub.f32 %v104, %v947
    %949 = vmatpush.msra.mxu0 %v948
    %v950 = vand.u32 %v103, 4294901760
    %v951 = vsub.f32 %v103, %v950
    %952 = vmatpush.msra.mxu0 %v951
    %v953 = vand.u32 %v102, 4294901760
    %v954 = vsub.f32 %v102, %v953
    %955 = vmatpush.msra.mxu0 %v954
    %v956 = vand.u32 %v101, 4294901760
    %v957 = vsub.f32 %v101, %v956
    %958 = vmatpush.msra.mxu0 %v957
    %v959 = vand.u32 %v100, 4294901760
    %v960 = vsub.f32 %v100, %v959
    %961 = vmatpush.msra.mxu0 %v960
    %v962 = vand.u32 %v99, 4294901760
    %v963 = vsub.f32 %v99, %v962
    %964 = vmatpush.msra.mxu0 %v963
    %v965 = vand.u32 %v98, 4294901760
    %v966 = vsub.f32 %v98, %v965
    %967 = vmatpush.msra.mxu0 %v966
    %v968 = vand.u32 %v97, 4294901760
    %v969 = vsub.f32 %v97, %v968
    %970 = vmatpush.msra.mxu0 %v969
    %v971 = vand.u32 %v96, 4294901760
    %v972 = vsub.f32 %v96, %v971
    %973 = vmatpush.msra.mxu0 %v972
    %v974 = vand.u32 %v95, 4294901760
    %v975 = vsub.f32 %v95, %v974
    %976 = vmatpush.msra.mxu0 %v975
    %v977 = vand.u32 %v94, 4294901760
    %v978 = vsub.f32 %v94, %v977
    %979 = vmatpush.msra.mxu0 %v978
    %v980 = vand.u32 %v93, 4294901760
    %v981 = vsub.f32 %v93, %v980
    %982 = vmatpush.msra.mxu0 %v981
    %v983 = vand.u32 %v92, 4294901760
    %v984 = vsub.f32 %v92, %v983
    %985 = vmatpush.msra.mxu0 %v984
    %v986 = vand.u32 %v91, 4294901760
    %v987 = vsub.f32 %v91, %v986
    %988 = vmatpush.msra.mxu0 %v987
    %v989 = vand.u32 %v90, 4294901760
    %v990 = vsub.f32 %v90, %v989
    %991 = vmatpush.msra.mxu0 %v990
    %v992 = vand.u32 %v801, 4294901760
    %v993 = vsub.f32 %v801, %v992
    %994 = vmatmul.f32.gmra.mxu0 %v993
    %v995 = vpop.f32.mrf.mxu0
    %v996 = vadd.f32 %v942, %v995
    %997 = vdwg.mxu0
    %v998 = vand.u32 %v105, 4294901760
    %999 = vmatpush.msra.mxu0 %v998
    %v1000 = vand.u32 %v104, 4294901760
    %1001 = vmatpush.msra.mxu0 %v1000
    %v1002 = vand.u32 %v103, 4294901760
    %1003 = vmatpush.msra.mxu0 %v1002
    %v1004 = vand.u32 %v102, 4294901760
    %1005 = vmatpush.msra.mxu0 %v1004
    %v1006 = vand.u32 %v101, 4294901760
    %1007 = vmatpush.msra.mxu0 %v1006
    %v1008 = vand.u32 %v100, 4294901760
    %1009 = vmatpush.msra.mxu0 %v1008
    %v1010 = vand.u32 %v99, 4294901760
    %1011 = vmatpush.msra.mxu0 %v1010
    %v1012 = vand.u32 %v98, 4294901760
    %1013 = vmatpush.msra.mxu0 %v1012
    %v1014 = vand.u32 %v97, 4294901760
    %1015 = vmatpush.msra.mxu0 %v1014
    %v1016 = vand.u32 %v96, 4294901760
    %1017 = vmatpush.msra.mxu0 %v1016
    %v1018 = vand.u32 %v95, 4294901760
    %1019 = vmatpush.msra.mxu0 %v1018
    %v1020 = vand.u32 %v94, 4294901760
    %1021 = vmatpush.msra.mxu0 %v1020
    %v1022 = vand.u32 %v93, 4294901760
    %1023 = vmatpush.msra.mxu0 %v1022
    %v1024 = vand.u32 %v92, 4294901760
    %1025 = vmatpush.msra.mxu0 %v1024
    %v1026 = vand.u32 %v91, 4294901760
    %1027 = vmatpush.msra.mxu0 %v1026
    %v1028 = vand.u32 %v90, 4294901760
    %1029 = vmatpush.msra.mxu0 %v1028
    %v1030 = vand.u32 %v801, 4294901760
    %v1031 = vsub.f32 %v801, %v1030
    %v1032 = vand.u32 %v1031, 4294901760
    %1033 = vmatmul.f32.gmra.mxu0 %v1032
    %v1034 = vpop.f32.mrf.mxu0
    %v1035 = vadd.f32 %v996, %v1034
    %1036 = vdwg.mxu0
    %v1037 = vand.u32 %v105, 4294901760
    %v1038 = vsub.f32 %v105, %v1037
    %v1039 = vand.u32 %v1038, 4294901760
    %1040 = vmatpush.msra.mxu0 %v1039
    %v1041 = vand.u32 %v104, 4294901760
    %v1042 = vsub.f32 %v104, %v1041
    %v1043 = vand.u32 %v1042, 4294901760
    %1044 = vmatpush.msra.mxu0 %v1043
    %v1045 = vand.u32 %v103, 4294901760
    %v1046 = vsub.f32 %v103, %v1045
    %v1047 = vand.u32 %v1046, 4294901760
    %1048 = vmatpush.msra.mxu0 %v1047
    %v1049 = vand.u32 %v102, 4294901760
    %v1050 = vsub.f32 %v102, %v1049
    %v1051 = vand.u32 %v1050, 4294901760
    %1052 = vmatpush.msra.mxu0 %v1051
    %v1053 = vand.u32 %v101, 4294901760
    %v1054 = vsub.f32 %v101, %v1053
    %v1055 = vand.u32 %v1054, 4294901760
    %1056 = vmatpush.msra.mxu0 %v1055
    %v1057 = vand.u32 %v100, 4294901760
    %v1058 = vsub.f32 %v100, %v1057
    %v1059 = vand.u32 %v1058, 4294901760
    %1060 = vmatpush.msra.mxu0 %v1059
    %v1061 = vand.u32 %v99, 4294901760
    %v1062 = vsub.f32 %v99, %v1061
    %v1063 = vand.u32 %v1062, 4294901760
    %1064 = vmatpush.msra.mxu0 %v1063
    %v1065 = vand.u32 %v98, 4294901760
    %v1066 = vsub.f32 %v98, %v1065
    %v1067 = vand.u32 %v1066, 4294901760
    %1068 = vmatpush.msra.mxu0 %v1067
    %v1069 = vand.u32 %v97, 4294901760
    %v1070 = vsub.f32 %v97, %v1069
    %v1071 = vand.u32 %v1070, 4294901760
    %1072 = vmatpush.msra.mxu0 %v1071
    %v1073 = vand.u32 %v96, 4294901760
    %v1074 = vsub.f32 %v96, %v1073
    %v1075 = vand.u32 %v1074, 4294901760
    %1076 = vmatpush.msra.mxu0 %v1075
    %v1077 = vand.u32 %v95, 4294901760
    %v1078 = vsub.f32 %v95, %v1077
    %v1079 = vand.u32 %v1078, 4294901760
    %1080 = vmatpush.msra.mxu0 %v1079
    %v1081 = vand.u32 %v94, 4294901760
    %v1082 = vsub.f32 %v94, %v1081
    %v1083 = vand.u32 %v1082, 4294901760
    %1084 = vmatpush.msra.mxu0 %v1083
    %v1085 = vand.u32 %v93, 4294901760
    %v1086 = vsub.f32 %v93, %v1085
    %v1087 = vand.u32 %v1086, 4294901760
    %1088 = vmatpush.msra.mxu0 %v1087
    %v1089 = vand.u32 %v92, 4294901760
    %v1090 = vsub.f32 %v92, %v1089
    %v1091 = vand.u32 %v1090, 4294901760
    %1092 = vmatpush.msra.mxu0 %v1091
    %v1093 = vand.u32 %v91, 4294901760
    %v1094 = vsub.f32 %v91, %v1093
    %v1095 = vand.u32 %v1094, 4294901760
    %1096 = vmatpush.msra.mxu0 %v1095
    %v1097 = vand.u32 %v90, 4294901760
    %v1098 = vsub.f32 %v90, %v1097
    %v1099 = vand.u32 %v1098, 4294901760
    %1100 = vmatpush.msra.mxu0 %v1099
    %v1101 = vand.u32 %v801, 4294901760
    %1102 = vmatmul.f32.gmra.mxu0 %v1101
    %v1103 = vpop.f32.mrf.mxu0
    %v1104 = vadd.f32 %v1035, %v1103
    %1105 = vdwg.mxu0
    %v1106 = vand.u32 %v105, 4294901760
    %1107 = vmatpush.msra.mxu0 %v1106
    %v1108 = vand.u32 %v104, 4294901760
    %1109 = vmatpush.msra.mxu0 %v1108
    %v1110 = vand.u32 %v103, 4294901760
    %1111 = vmatpush.msra.mxu0 %v1110
    %v1112 = vand.u32 %v102, 4294901760
    %1113 = vmatpush.msra.mxu0 %v1112
    %v1114 = vand.u32 %v101, 4294901760
    %1115 = vmatpush.msra.mxu0 %v1114
    %v1116 = vand.u32 %v100, 4294901760
    %1117 = vmatpush.msra.mxu0 %v1116
    %v1118 = vand.u32 %v99, 4294901760
    %1119 = vmatpush.msra.mxu0 %v1118
    %v1120 = vand.u32 %v98, 4294901760
    %1121 = vmatpush.msra.mxu0 %v1120
    %v1122 = vand.u32 %v97, 4294901760
    %1123 = vmatpush.msra.mxu0 %v1122
    %v1124 = vand.u32 %v96, 4294901760
    %1125 = vmatpush.msra.mxu0 %v1124
    %v1126 = vand.u32 %v95, 4294901760
    %1127 = vmatpush.msra.mxu0 %v1126
    %v1128 = vand.u32 %v94, 4294901760
    %1129 = vmatpush.msra.mxu0 %v1128
    %v1130 = vand.u32 %v93, 4294901760
    %1131 = vmatpush.msra.mxu0 %v1130
    %v1132 = vand.u32 %v92, 4294901760
    %1133 = vmatpush.msra.mxu0 %v1132
    %v1134 = vand.u32 %v91, 4294901760
    %1135 = vmatpush.msra.mxu0 %v1134
    %v1136 = vand.u32 %v90, 4294901760
    %1137 = vmatpush.msra.mxu0 %v1136
    %v1138 = vand.u32 %v801, 4294901760
    %1139 = vmatmul.f32.gmra.mxu0 %v1138
    %v1140 = vpop.f32.mrf.mxu0
    %v1141 = vadd.f32 %v1104, %v1140
    %1142 = vdwg.mxu0
    %v1143 = vmax.f32 %v1141, 0.0
    %v1144 = vadd.f32 %v637, %v1143
    %1145 = vrot.lane.b32.xlu0 %v125, 96
    %v1146 = vpop.permute.xlu0 %1145
    %v1147 = vsel %vm129, %v1146, 0
    %1149 = vmatpush.msra.mxu0 0.0
    %1150 = vmatpush.msra.mxu0 0.0
    %1151 = vmatpush.msra.mxu0 0.0
    %1152 = vmatpush.msra.mxu0 0.0
    %1153 = vmatpush.msra.mxu0 0.0
    %1154 = vmatpush.msra.mxu0 0.0
    %1155 = vmatpush.msra.mxu0 0.0
    %1156 = vmatpush.msra.mxu0 0.0
    %1157 = vmatpush.msra.mxu0 0.0
    %1158 = vmatpush.msra.mxu0 0.0
    %1159 = vmatpush.msra.mxu0 0.0
    %1160 = vmatpush.msra.mxu0 0.0
    %1161 = vmatpush.msra.mxu0 0.0
    %1162 = vmatpush.msra.mxu0 0.0
    %v1163 = vand.u32 %v89, 4294901760
    %1164 = vmatpush.msra.mxu0 %v1163
    %v1165 = vand.u32 %v88, 4294901760
    %1166 = vmatpush.msra.mxu0 %v1165
    %v1167 = vand.u32 %v1147, 4294901760
    %v1168 = vsub.f32 %v1147, %v1167
    %v1169 = vand.u32 %v1168, 4294901760
    %v1170 = vsub.f32 %v1168, %v1169
    %v1171 = vand.u32 %v1170, 4294901760
    %1172 = vmatmul.f32.gmra.mxu0 %v1171
    %v1173 = vpop.f32.mrf.mxu0
    %v1174 = vadd.f32 %v127, %v1173
    %1175 = vdwg.mxu0
    %1176 = vmatpush.msra.mxu0 0.0
    %1177 = vmatpush.msra.mxu0 0.0
    %1178 = vmatpush.msra.mxu0 0.0
    %1179 = vmatpush.msra.mxu0 0.0
    %1180 = vmatpush.msra.mxu0 0.0
    %1181 = vmatpush.msra.mxu0 0.0
    %1182 = vmatpush.msra.mxu0 0.0
    %1183 = vmatpush.msra.mxu0 0.0
    %1184 = vmatpush.msra.mxu0 0.0
    %1185 = vmatpush.msra.mxu0 0.0
    %1186 = vmatpush.msra.mxu0 0.0
    %1187 = vmatpush.msra.mxu0 0.0
    %1188 = vmatpush.msra.mxu0 0.0
    %1189 = vmatpush.msra.mxu0 0.0
    %v1190 = vand.u32 %v89, 4294901760
    %v1191 = vsub.f32 %v89, %v1190
    %v1192 = vand.u32 %v1191, 4294901760
    %v1193 = vsub.f32 %v1191, %v1192
    %v1194 = vand.u32 %v1193, 4294901760
    %1195 = vmatpush.msra.mxu0 %v1194
    %v1196 = vand.u32 %v88, 4294901760
    %v1197 = vsub.f32 %v88, %v1196
    %v1198 = vand.u32 %v1197, 4294901760
    %v1199 = vsub.f32 %v1197, %v1198
    %v1200 = vand.u32 %v1199, 4294901760
    %1201 = vmatpush.msra.mxu0 %v1200
    %v1202 = vand.u32 %v1147, 4294901760
    %1203 = vmatmul.f32.gmra.mxu0 %v1202
    %v1204 = vpop.f32.mrf.mxu0
    %v1205 = vadd.f32 %v1174, %v1204
    %1206 = vdwg.mxu0
    %1207 = vmatpush.msra.mxu0 0.0
    %1208 = vmatpush.msra.mxu0 0.0
    %1209 = vmatpush.msra.mxu0 0.0
    %1210 = vmatpush.msra.mxu0 0.0
    %1211 = vmatpush.msra.mxu0 0.0
    %1212 = vmatpush.msra.mxu0 0.0
    %1213 = vmatpush.msra.mxu0 0.0
    %1214 = vmatpush.msra.mxu0 0.0
    %1215 = vmatpush.msra.mxu0 0.0
    %1216 = vmatpush.msra.mxu0 0.0
    %1217 = vmatpush.msra.mxu0 0.0
    %1218 = vmatpush.msra.mxu0 0.0
    %1219 = vmatpush.msra.mxu0 0.0
    %1220 = vmatpush.msra.mxu0 0.0
    %v1221 = vand.u32 %v89, 4294901760
    %v1222 = vsub.f32 %v89, %v1221
    %1223 = vmatpush.msra.mxu0 %v1222
    %v1224 = vand.u32 %v88, 4294901760
    %v1225 = vsub.f32 %v88, %v1224
    %1226 = vmatpush.msra.mxu0 %v1225
    %v1227 = vand.u32 %v1147, 4294901760
    %v1228 = vsub.f32 %v1147, %v1227
    %1229 = vmatmul.f32.gmra.mxu0 %v1228
    %v1230 = vpop.f32.mrf.mxu0
    %v1231 = vadd.f32 %v1205, %v1230
    %1232 = vdwg.mxu0
    %1233 = vmatpush.msra.mxu0 0.0
    %1234 = vmatpush.msra.mxu0 0.0
    %1235 = vmatpush.msra.mxu0 0.0
    %1236 = vmatpush.msra.mxu0 0.0
    %1237 = vmatpush.msra.mxu0 0.0
    %1238 = vmatpush.msra.mxu0 0.0
    %1239 = vmatpush.msra.mxu0 0.0
    %1240 = vmatpush.msra.mxu0 0.0
    %1241 = vmatpush.msra.mxu0 0.0
    %1242 = vmatpush.msra.mxu0 0.0
    %1243 = vmatpush.msra.mxu0 0.0
    %1244 = vmatpush.msra.mxu0 0.0
    %1245 = vmatpush.msra.mxu0 0.0
    %1246 = vmatpush.msra.mxu0 0.0
    %v1247 = vand.u32 %v89, 4294901760
    %1248 = vmatpush.msra.mxu0 %v1247
    %v1249 = vand.u32 %v88, 4294901760
    %1250 = vmatpush.msra.mxu0 %v1249
    %v1251 = vand.u32 %v1147, 4294901760
    %v1252 = vsub.f32 %v1147, %v1251
    %v1253 = vand.u32 %v1252, 4294901760
    %1254 = vmatmul.f32.gmra.mxu0 %v1253
    %v1255 = vpop.f32.mrf.mxu0
    %v1256 = vadd.f32 %v1231, %v1255
    %1257 = vdwg.mxu0
    %1258 = vmatpush.msra.mxu0 0.0
    %1259 = vmatpush.msra.mxu0 0.0
    %1260 = vmatpush.msra.mxu0 0.0
    %1261 = vmatpush.msra.mxu0 0.0
    %1262 = vmatpush.msra.mxu0 0.0
    %1263 = vmatpush.msra.mxu0 0.0
    %1264 = vmatpush.msra.mxu0 0.0
    %1265 = vmatpush.msra.mxu0 0.0
    %1266 = vmatpush.msra.mxu0 0.0
    %1267 = vmatpush.msra.mxu0 0.0
    %1268 = vmatpush.msra.mxu0 0.0
    %1269 = vmatpush.msra.mxu0 0.0
    %1270 = vmatpush.msra.mxu0 0.0
    %1271 = vmatpush.msra.mxu0 0.0
    %v1272 = vand.u32 %v89, 4294901760
    %v1273 = vsub.f32 %v89, %v1272
    %v1274 = vand.u32 %v1273, 4294901760
    %1275 = vmatpush.msra.mxu0 %v1274
    %v1276 = vand.u32 %v88, 4294901760
    %v1277 = vsub.f32 %v88, %v1276
    %v1278 = vand.u32 %v1277, 4294901760
    %1279 = vmatpush.msra.mxu0 %v1278
    %v1280 = vand.u32 %v1147, 4294901760
    %1281 = vmatmul.f32.gmra.mxu0 %v1280
    %v1282 = vpop.f32.mrf.mxu0
    %v1283 = vadd.f32 %v1256, %v1282
    %1284 = vdwg.mxu0
    %1285 = vmatpush.msra.mxu0 0.0
    %1286 = vmatpush.msra.mxu0 0.0
    %1287 = vmatpush.msra.mxu0 0.0
    %1288 = vmatpush.msra.mxu0 0.0
    %1289 = vmatpush.msra.mxu0 0.0
    %1290 = vmatpush.msra.mxu0 0.0
    %1291 = vmatpush.msra.mxu0 0.0
    %1292 = vmatpush.msra.mxu0 0.0
    %1293 = vmatpush.msra.mxu0 0.0
    %1294 = vmatpush.msra.mxu0 0.0
    %1295 = vmatpush.msra.mxu0 0.0
    %1296 = vmatpush.msra.mxu0 0.0
    %1297 = vmatpush.msra.mxu0 0.0
    %1298 = vmatpush.msra.mxu0 0.0
    %v1299 = vand.u32 %v89, 4294901760
    %1300 = vmatpush.msra.mxu0 %v1299
    %v1301 = vand.u32 %v88, 4294901760
    %1302 = vmatpush.msra.mxu0 %v1301
    %v1303 = vand.u32 %v1147, 4294901760
    %1304 = vmatmul.f32.gmra.mxu0 %v1303
    %v1305 = vpop.f32.mrf.mxu0
    %v1306 = vadd.f32 %v1283, %v1305
    %1307 = vdwg.mxu0
    %v1308 = vmax.f32 %v1306, 0.0
    %v1309 = vand.u32 %v105, 4294901760
    %1310 = vmatpush.msra.mxu0 %v1309
    %v1311 = vand.u32 %v104, 4294901760
    %1312 = vmatpush.msra.mxu0 %v1311
    %v1313 = vand.u32 %v103, 4294901760
    %1314 = vmatpush.msra.mxu0 %v1313
    %v1315 = vand.u32 %v102, 4294901760
    %1316 = vmatpush.msra.mxu0 %v1315
    %v1317 = vand.u32 %v101, 4294901760
    %1318 = vmatpush.msra.mxu0 %v1317
    %v1319 = vand.u32 %v100, 4294901760
    %1320 = vmatpush.msra.mxu0 %v1319
    %v1321 = vand.u32 %v99, 4294901760
    %1322 = vmatpush.msra.mxu0 %v1321
    %v1323 = vand.u32 %v98, 4294901760
    %1324 = vmatpush.msra.mxu0 %v1323
    %v1325 = vand.u32 %v97, 4294901760
    %1326 = vmatpush.msra.mxu0 %v1325
    %v1327 = vand.u32 %v96, 4294901760
    %1328 = vmatpush.msra.mxu0 %v1327
    %v1329 = vand.u32 %v95, 4294901760
    %1330 = vmatpush.msra.mxu0 %v1329
    %v1331 = vand.u32 %v94, 4294901760
    %1332 = vmatpush.msra.mxu0 %v1331
    %v1333 = vand.u32 %v93, 4294901760
    %1334 = vmatpush.msra.mxu0 %v1333
    %v1335 = vand.u32 %v92, 4294901760
    %1336 = vmatpush.msra.mxu0 %v1335
    %v1337 = vand.u32 %v91, 4294901760
    %1338 = vmatpush.msra.mxu0 %v1337
    %v1339 = vand.u32 %v90, 4294901760
    %1340 = vmatpush.msra.mxu0 %v1339
    %v1341 = vand.u32 %v1308, 4294901760
    %v1342 = vsub.f32 %v1308, %v1341
    %v1343 = vand.u32 %v1342, 4294901760
    %v1344 = vsub.f32 %v1342, %v1343
    %v1345 = vand.u32 %v1344, 4294901760
    %1346 = vmatmul.f32.gmra.mxu0 %v1345
    %v1347 = vpop.f32.mrf.mxu0
    %v1348 = vadd.f32 %v294, %v1347
    %1349 = vdwg.mxu0
    %v1350 = vand.u32 %v105, 4294901760
    %v1351 = vsub.f32 %v105, %v1350
    %v1352 = vand.u32 %v1351, 4294901760
    %v1353 = vsub.f32 %v1351, %v1352
    %v1354 = vand.u32 %v1353, 4294901760
    %1355 = vmatpush.msra.mxu0 %v1354
    %v1356 = vand.u32 %v104, 4294901760
    %v1357 = vsub.f32 %v104, %v1356
    %v1358 = vand.u32 %v1357, 4294901760
    %v1359 = vsub.f32 %v1357, %v1358
    %v1360 = vand.u32 %v1359, 4294901760
    %1361 = vmatpush.msra.mxu0 %v1360
    %v1362 = vand.u32 %v103, 4294901760
    %v1363 = vsub.f32 %v103, %v1362
    %v1364 = vand.u32 %v1363, 4294901760
    %v1365 = vsub.f32 %v1363, %v1364
    %v1366 = vand.u32 %v1365, 4294901760
    %1367 = vmatpush.msra.mxu0 %v1366
    %v1368 = vand.u32 %v102, 4294901760
    %v1369 = vsub.f32 %v102, %v1368
    %v1370 = vand.u32 %v1369, 4294901760
    %v1371 = vsub.f32 %v1369, %v1370
    %v1372 = vand.u32 %v1371, 4294901760
    %1373 = vmatpush.msra.mxu0 %v1372
    %v1374 = vand.u32 %v101, 4294901760
    %v1375 = vsub.f32 %v101, %v1374
    %v1376 = vand.u32 %v1375, 4294901760
    %v1377 = vsub.f32 %v1375, %v1376
    %v1378 = vand.u32 %v1377, 4294901760
    %1379 = vmatpush.msra.mxu0 %v1378
    %v1380 = vand.u32 %v100, 4294901760
    %v1381 = vsub.f32 %v100, %v1380
    %v1382 = vand.u32 %v1381, 4294901760
    %v1383 = vsub.f32 %v1381, %v1382
    %v1384 = vand.u32 %v1383, 4294901760
    %1385 = vmatpush.msra.mxu0 %v1384
    %v1386 = vand.u32 %v99, 4294901760
    %v1387 = vsub.f32 %v99, %v1386
    %v1388 = vand.u32 %v1387, 4294901760
    %v1389 = vsub.f32 %v1387, %v1388
    %v1390 = vand.u32 %v1389, 4294901760
    %1391 = vmatpush.msra.mxu0 %v1390
    %v1392 = vand.u32 %v98, 4294901760
    %v1393 = vsub.f32 %v98, %v1392
    %v1394 = vand.u32 %v1393, 4294901760
    %v1395 = vsub.f32 %v1393, %v1394
    %v1396 = vand.u32 %v1395, 4294901760
    %1397 = vmatpush.msra.mxu0 %v1396
    %v1398 = vand.u32 %v97, 4294901760
    %v1399 = vsub.f32 %v97, %v1398
    %v1400 = vand.u32 %v1399, 4294901760
    %v1401 = vsub.f32 %v1399, %v1400
    %v1402 = vand.u32 %v1401, 4294901760
    %1403 = vmatpush.msra.mxu0 %v1402
    %v1404 = vand.u32 %v96, 4294901760
    %v1405 = vsub.f32 %v96, %v1404
    %v1406 = vand.u32 %v1405, 4294901760
    %v1407 = vsub.f32 %v1405, %v1406
    %v1408 = vand.u32 %v1407, 4294901760
    %1409 = vmatpush.msra.mxu0 %v1408
    %v1410 = vand.u32 %v95, 4294901760
    %v1411 = vsub.f32 %v95, %v1410
    %v1412 = vand.u32 %v1411, 4294901760
    %v1413 = vsub.f32 %v1411, %v1412
    %v1414 = vand.u32 %v1413, 4294901760
    %1415 = vmatpush.msra.mxu0 %v1414
    %v1416 = vand.u32 %v94, 4294901760
    %v1417 = vsub.f32 %v94, %v1416
    %v1418 = vand.u32 %v1417, 4294901760
    %v1419 = vsub.f32 %v1417, %v1418
    %v1420 = vand.u32 %v1419, 4294901760
    %1421 = vmatpush.msra.mxu0 %v1420
    %v1422 = vand.u32 %v93, 4294901760
    %v1423 = vsub.f32 %v93, %v1422
    %v1424 = vand.u32 %v1423, 4294901760
    %v1425 = vsub.f32 %v1423, %v1424
    %v1426 = vand.u32 %v1425, 4294901760
    %1427 = vmatpush.msra.mxu0 %v1426
    %v1428 = vand.u32 %v92, 4294901760
    %v1429 = vsub.f32 %v92, %v1428
    %v1430 = vand.u32 %v1429, 4294901760
    %v1431 = vsub.f32 %v1429, %v1430
    %v1432 = vand.u32 %v1431, 4294901760
    %1433 = vmatpush.msra.mxu0 %v1432
    %v1434 = vand.u32 %v91, 4294901760
    %v1435 = vsub.f32 %v91, %v1434
    %v1436 = vand.u32 %v1435, 4294901760
    %v1437 = vsub.f32 %v1435, %v1436
    %v1438 = vand.u32 %v1437, 4294901760
    %1439 = vmatpush.msra.mxu0 %v1438
    %v1440 = vand.u32 %v90, 4294901760
    %v1441 = vsub.f32 %v90, %v1440
    %v1442 = vand.u32 %v1441, 4294901760
    %v1443 = vsub.f32 %v1441, %v1442
    %v1444 = vand.u32 %v1443, 4294901760
    %1445 = vmatpush.msra.mxu0 %v1444
    %v1446 = vand.u32 %v1308, 4294901760
    %1447 = vmatmul.f32.gmra.mxu0 %v1446
    %v1448 = vpop.f32.mrf.mxu0
    %v1449 = vadd.f32 %v1348, %v1448
    %1450 = vdwg.mxu0
    %v1451 = vand.u32 %v105, 4294901760
    %v1452 = vsub.f32 %v105, %v1451
    %1453 = vmatpush.msra.mxu0 %v1452
    %v1454 = vand.u32 %v104, 4294901760
    %v1455 = vsub.f32 %v104, %v1454
    %1456 = vmatpush.msra.mxu0 %v1455
    %v1457 = vand.u32 %v103, 4294901760
    %v1458 = vsub.f32 %v103, %v1457
    %1459 = vmatpush.msra.mxu0 %v1458
    %v1460 = vand.u32 %v102, 4294901760
    %v1461 = vsub.f32 %v102, %v1460
    %1462 = vmatpush.msra.mxu0 %v1461
    %v1463 = vand.u32 %v101, 4294901760
    %v1464 = vsub.f32 %v101, %v1463
    %1465 = vmatpush.msra.mxu0 %v1464
    %v1466 = vand.u32 %v100, 4294901760
    %v1467 = vsub.f32 %v100, %v1466
    %1468 = vmatpush.msra.mxu0 %v1467
    %v1469 = vand.u32 %v99, 4294901760
    %v1470 = vsub.f32 %v99, %v1469
    %1471 = vmatpush.msra.mxu0 %v1470
    %v1472 = vand.u32 %v98, 4294901760
    %v1473 = vsub.f32 %v98, %v1472
    %1474 = vmatpush.msra.mxu0 %v1473
    %v1475 = vand.u32 %v97, 4294901760
    %v1476 = vsub.f32 %v97, %v1475
    %1477 = vmatpush.msra.mxu0 %v1476
    %v1478 = vand.u32 %v96, 4294901760
    %v1479 = vsub.f32 %v96, %v1478
    %1480 = vmatpush.msra.mxu0 %v1479
    %v1481 = vand.u32 %v95, 4294901760
    %v1482 = vsub.f32 %v95, %v1481
    %1483 = vmatpush.msra.mxu0 %v1482
    %v1484 = vand.u32 %v94, 4294901760
    %v1485 = vsub.f32 %v94, %v1484
    %1486 = vmatpush.msra.mxu0 %v1485
    %v1487 = vand.u32 %v93, 4294901760
    %v1488 = vsub.f32 %v93, %v1487
    %1489 = vmatpush.msra.mxu0 %v1488
    %v1490 = vand.u32 %v92, 4294901760
    %v1491 = vsub.f32 %v92, %v1490
    %1492 = vmatpush.msra.mxu0 %v1491
    %v1493 = vand.u32 %v91, 4294901760
    %v1494 = vsub.f32 %v91, %v1493
    %1495 = vmatpush.msra.mxu0 %v1494
    %v1496 = vand.u32 %v90, 4294901760
    %v1497 = vsub.f32 %v90, %v1496
    %1498 = vmatpush.msra.mxu0 %v1497
    %v1499 = vand.u32 %v1308, 4294901760
    %v1500 = vsub.f32 %v1308, %v1499
    %1501 = vmatmul.f32.gmra.mxu0 %v1500
    %v1502 = vpop.f32.mrf.mxu0
    %v1503 = vadd.f32 %v1449, %v1502
    %1504 = vdwg.mxu0
    %v1505 = vand.u32 %v105, 4294901760
    %1506 = vmatpush.msra.mxu0 %v1505
    %v1507 = vand.u32 %v104, 4294901760
    %1508 = vmatpush.msra.mxu0 %v1507
    %v1509 = vand.u32 %v103, 4294901760
    %1510 = vmatpush.msra.mxu0 %v1509
    %v1511 = vand.u32 %v102, 4294901760
    %1512 = vmatpush.msra.mxu0 %v1511
    %v1513 = vand.u32 %v101, 4294901760
    %1514 = vmatpush.msra.mxu0 %v1513
    %v1515 = vand.u32 %v100, 4294901760
    %1516 = vmatpush.msra.mxu0 %v1515
    %v1517 = vand.u32 %v99, 4294901760
    %1518 = vmatpush.msra.mxu0 %v1517
    %v1519 = vand.u32 %v98, 4294901760
    %1520 = vmatpush.msra.mxu0 %v1519
    %v1521 = vand.u32 %v97, 4294901760
    %1522 = vmatpush.msra.mxu0 %v1521
    %v1523 = vand.u32 %v96, 4294901760
    %1524 = vmatpush.msra.mxu0 %v1523
    %v1525 = vand.u32 %v95, 4294901760
    %1526 = vmatpush.msra.mxu0 %v1525
    %v1527 = vand.u32 %v94, 4294901760
    %1528 = vmatpush.msra.mxu0 %v1527
    %v1529 = vand.u32 %v93, 4294901760
    %1530 = vmatpush.msra.mxu0 %v1529
    %v1531 = vand.u32 %v92, 4294901760
    %1532 = vmatpush.msra.mxu0 %v1531
    %v1533 = vand.u32 %v91, 4294901760
    %1534 = vmatpush.msra.mxu0 %v1533
    %v1535 = vand.u32 %v90, 4294901760
    %1536 = vmatpush.msra.mxu0 %v1535
    %v1537 = vand.u32 %v1308, 4294901760
    %v1538 = vsub.f32 %v1308, %v1537
    %v1539 = vand.u32 %v1538, 4294901760
    %1540 = vmatmul.f32.gmra.mxu0 %v1539
    %v1541 = vpop.f32.mrf.mxu0
    %v1542 = vadd.f32 %v1503, %v1541
    %1543 = vdwg.mxu0
    %v1544 = vand.u32 %v105, 4294901760
    %v1545 = vsub.f32 %v105, %v1544
    %v1546 = vand.u32 %v1545, 4294901760
    %1547 = vmatpush.msra.mxu0 %v1546
    %v1548 = vand.u32 %v104, 4294901760
    %v1549 = vsub.f32 %v104, %v1548
    %v1550 = vand.u32 %v1549, 4294901760
    %1551 = vmatpush.msra.mxu0 %v1550
    %v1552 = vand.u32 %v103, 4294901760
    %v1553 = vsub.f32 %v103, %v1552
    %v1554 = vand.u32 %v1553, 4294901760
    %1555 = vmatpush.msra.mxu0 %v1554
    %v1556 = vand.u32 %v102, 4294901760
    %v1557 = vsub.f32 %v102, %v1556
    %v1558 = vand.u32 %v1557, 4294901760
    %1559 = vmatpush.msra.mxu0 %v1558
    %v1560 = vand.u32 %v101, 4294901760
    %v1561 = vsub.f32 %v101, %v1560
    %v1562 = vand.u32 %v1561, 4294901760
    %1563 = vmatpush.msra.mxu0 %v1562
    %v1564 = vand.u32 %v100, 4294901760
    %v1565 = vsub.f32 %v100, %v1564
    %v1566 = vand.u32 %v1565, 4294901760
    %1567 = vmatpush.msra.mxu0 %v1566
    %v1568 = vand.u32 %v99, 4294901760
    %v1569 = vsub.f32 %v99, %v1568
    %v1570 = vand.u32 %v1569, 4294901760
    %1571 = vmatpush.msra.mxu0 %v1570
    %v1572 = vand.u32 %v98, 4294901760
    %v1573 = vsub.f32 %v98, %v1572
    %v1574 = vand.u32 %v1573, 4294901760
    %1575 = vmatpush.msra.mxu0 %v1574
    %v1576 = vand.u32 %v97, 4294901760
    %v1577 = vsub.f32 %v97, %v1576
    %v1578 = vand.u32 %v1577, 4294901760
    %1579 = vmatpush.msra.mxu0 %v1578
    %v1580 = vand.u32 %v96, 4294901760
    %v1581 = vsub.f32 %v96, %v1580
    %v1582 = vand.u32 %v1581, 4294901760
    %1583 = vmatpush.msra.mxu0 %v1582
    %v1584 = vand.u32 %v95, 4294901760
    %v1585 = vsub.f32 %v95, %v1584
    %v1586 = vand.u32 %v1585, 4294901760
    %1587 = vmatpush.msra.mxu0 %v1586
    %v1588 = vand.u32 %v94, 4294901760
    %v1589 = vsub.f32 %v94, %v1588
    %v1590 = vand.u32 %v1589, 4294901760
    %1591 = vmatpush.msra.mxu0 %v1590
    %v1592 = vand.u32 %v93, 4294901760
    %v1593 = vsub.f32 %v93, %v1592
    %v1594 = vand.u32 %v1593, 4294901760
    %1595 = vmatpush.msra.mxu0 %v1594
    %v1596 = vand.u32 %v92, 4294901760
    %v1597 = vsub.f32 %v92, %v1596
    %v1598 = vand.u32 %v1597, 4294901760
    %1599 = vmatpush.msra.mxu0 %v1598
    %v1600 = vand.u32 %v91, 4294901760
    %v1601 = vsub.f32 %v91, %v1600
    %v1602 = vand.u32 %v1601, 4294901760
    %1603 = vmatpush.msra.mxu0 %v1602
    %v1604 = vand.u32 %v90, 4294901760
    %v1605 = vsub.f32 %v90, %v1604
    %v1606 = vand.u32 %v1605, 4294901760
    %1607 = vmatpush.msra.mxu0 %v1606
    %v1608 = vand.u32 %v1308, 4294901760
    %1609 = vmatmul.f32.gmra.mxu0 %v1608
    %v1610 = vpop.f32.mrf.mxu0
    %v1611 = vadd.f32 %v1542, %v1610
    %1612 = vdwg.mxu0
    %v1613 = vand.u32 %v105, 4294901760
    %1614 = vmatpush.msra.mxu0 %v1613
    %v1615 = vand.u32 %v104, 4294901760
    %1616 = vmatpush.msra.mxu0 %v1615
    %v1617 = vand.u32 %v103, 4294901760
    %1618 = vmatpush.msra.mxu0 %v1617
    %v1619 = vand.u32 %v102, 4294901760
    %1620 = vmatpush.msra.mxu0 %v1619
    %v1621 = vand.u32 %v101, 4294901760
    %1622 = vmatpush.msra.mxu0 %v1621
    %v1623 = vand.u32 %v100, 4294901760
    %1624 = vmatpush.msra.mxu0 %v1623
    %v1625 = vand.u32 %v99, 4294901760
    %1626 = vmatpush.msra.mxu0 %v1625
    %v1627 = vand.u32 %v98, 4294901760
    %1628 = vmatpush.msra.mxu0 %v1627
    %v1629 = vand.u32 %v97, 4294901760
    %1630 = vmatpush.msra.mxu0 %v1629
    %v1631 = vand.u32 %v96, 4294901760
    %1632 = vmatpush.msra.mxu0 %v1631
    %v1633 = vand.u32 %v95, 4294901760
    %1634 = vmatpush.msra.mxu0 %v1633
    %v1635 = vand.u32 %v94, 4294901760
    %1636 = vmatpush.msra.mxu0 %v1635
    %v1637 = vand.u32 %v93, 4294901760
    %1638 = vmatpush.msra.mxu0 %v1637
    %v1639 = vand.u32 %v92, 4294901760
    %1640 = vmatpush.msra.mxu0 %v1639
    %v1641 = vand.u32 %v91, 4294901760
    %1642 = vmatpush.msra.mxu0 %v1641
    %v1643 = vand.u32 %v90, 4294901760
    %1644 = vmatpush.msra.mxu0 %v1643
    %v1645 = vand.u32 %v1308, 4294901760
    %1646 = vmatmul.f32.gmra.mxu0 %v1645
    %v1647 = vpop.f32.mrf.mxu0
    %v1648 = vadd.f32 %v1611, %v1647
    %1649 = vdwg.mxu0
    %v1650 = vmax.f32 %v1648, 0.0
    %v1651 = vadd.f32 %v1144, %v1650
    %1652 = vrot.lane.b32.xlu0 %v125, 80
    %v1653 = vpop.permute.xlu0 %1652
    %v1654 = vsel %vm129, %v1653, 0
    %1656 = vmatpush.msra.mxu0 0.0
    %1657 = vmatpush.msra.mxu0 0.0
    %1658 = vmatpush.msra.mxu0 0.0
    %1659 = vmatpush.msra.mxu0 0.0
    %1660 = vmatpush.msra.mxu0 0.0
    %1661 = vmatpush.msra.mxu0 0.0
    %1662 = vmatpush.msra.mxu0 0.0
    %1663 = vmatpush.msra.mxu0 0.0
    %1664 = vmatpush.msra.mxu0 0.0
    %1665 = vmatpush.msra.mxu0 0.0
    %1666 = vmatpush.msra.mxu0 0.0
    %1667 = vmatpush.msra.mxu0 0.0
    %1668 = vmatpush.msra.mxu0 0.0
    %1669 = vmatpush.msra.mxu0 0.0
    %v1670 = vand.u32 %v89, 4294901760
    %1671 = vmatpush.msra.mxu0 %v1670
    %v1672 = vand.u32 %v88, 4294901760
    %1673 = vmatpush.msra.mxu0 %v1672
    %v1674 = vand.u32 %v1654, 4294901760
    %v1675 = vsub.f32 %v1654, %v1674
    %v1676 = vand.u32 %v1675, 4294901760
    %v1677 = vsub.f32 %v1675, %v1676
    %v1678 = vand.u32 %v1677, 4294901760
    %1679 = vmatmul.f32.gmra.mxu0 %v1678
    %v1680 = vpop.f32.mrf.mxu0
    %v1681 = vadd.f32 %v127, %v1680
    %1682 = vdwg.mxu0
    %1683 = vmatpush.msra.mxu0 0.0
    %1684 = vmatpush.msra.mxu0 0.0
    %1685 = vmatpush.msra.mxu0 0.0
    %1686 = vmatpush.msra.mxu0 0.0
    %1687 = vmatpush.msra.mxu0 0.0
    %1688 = vmatpush.msra.mxu0 0.0
    %1689 = vmatpush.msra.mxu0 0.0
    %1690 = vmatpush.msra.mxu0 0.0
    %1691 = vmatpush.msra.mxu0 0.0
    %1692 = vmatpush.msra.mxu0 0.0
    %1693 = vmatpush.msra.mxu0 0.0
    %1694 = vmatpush.msra.mxu0 0.0
    %1695 = vmatpush.msra.mxu0 0.0
    %1696 = vmatpush.msra.mxu0 0.0
    %v1697 = vand.u32 %v89, 4294901760
    %v1698 = vsub.f32 %v89, %v1697
    %v1699 = vand.u32 %v1698, 4294901760
    %v1700 = vsub.f32 %v1698, %v1699
    %v1701 = vand.u32 %v1700, 4294901760
    %1702 = vmatpush.msra.mxu0 %v1701
    %v1703 = vand.u32 %v88, 4294901760
    %v1704 = vsub.f32 %v88, %v1703
    %v1705 = vand.u32 %v1704, 4294901760
    %v1706 = vsub.f32 %v1704, %v1705
    %v1707 = vand.u32 %v1706, 4294901760
    %1708 = vmatpush.msra.mxu0 %v1707
    %v1709 = vand.u32 %v1654, 4294901760
    %1710 = vmatmul.f32.gmra.mxu0 %v1709
    %v1711 = vpop.f32.mrf.mxu0
    %v1712 = vadd.f32 %v1681, %v1711
    %1713 = vdwg.mxu0
    %1714 = vmatpush.msra.mxu0 0.0
    %1715 = vmatpush.msra.mxu0 0.0
    %1716 = vmatpush.msra.mxu0 0.0
    %1717 = vmatpush.msra.mxu0 0.0
    %1718 = vmatpush.msra.mxu0 0.0
    %1719 = vmatpush.msra.mxu0 0.0
    %1720 = vmatpush.msra.mxu0 0.0
    %1721 = vmatpush.msra.mxu0 0.0
    %1722 = vmatpush.msra.mxu0 0.0
    %1723 = vmatpush.msra.mxu0 0.0
    %1724 = vmatpush.msra.mxu0 0.0
    %1725 = vmatpush.msra.mxu0 0.0
    %1726 = vmatpush.msra.mxu0 0.0
    %1727 = vmatpush.msra.mxu0 0.0
    %v1728 = vand.u32 %v89, 4294901760
    %v1729 = vsub.f32 %v89, %v1728
    %1730 = vmatpush.msra.mxu0 %v1729
    %v1731 = vand.u32 %v88, 4294901760
    %v1732 = vsub.f32 %v88, %v1731
    %1733 = vmatpush.msra.mxu0 %v1732
    %v1734 = vand.u32 %v1654, 4294901760
    %v1735 = vsub.f32 %v1654, %v1734
    %1736 = vmatmul.f32.gmra.mxu0 %v1735
    %v1737 = vpop.f32.mrf.mxu0
    %v1738 = vadd.f32 %v1712, %v1737
    %1739 = vdwg.mxu0
    %1740 = vmatpush.msra.mxu0 0.0
    %1741 = vmatpush.msra.mxu0 0.0
    %1742 = vmatpush.msra.mxu0 0.0
    %1743 = vmatpush.msra.mxu0 0.0
    %1744 = vmatpush.msra.mxu0 0.0
    %1745 = vmatpush.msra.mxu0 0.0
    %1746 = vmatpush.msra.mxu0 0.0
    %1747 = vmatpush.msra.mxu0 0.0
    %1748 = vmatpush.msra.mxu0 0.0
    %1749 = vmatpush.msra.mxu0 0.0
    %1750 = vmatpush.msra.mxu0 0.0
    %1751 = vmatpush.msra.mxu0 0.0
    %1752 = vmatpush.msra.mxu0 0.0
    %1753 = vmatpush.msra.mxu0 0.0
    %v1754 = vand.u32 %v89, 4294901760
    %1755 = vmatpush.msra.mxu0 %v1754
    %v1756 = vand.u32 %v88, 4294901760
    %1757 = vmatpush.msra.mxu0 %v1756
    %v1758 = vand.u32 %v1654, 4294901760
    %v1759 = vsub.f32 %v1654, %v1758
    %v1760 = vand.u32 %v1759, 4294901760
    %1761 = vmatmul.f32.gmra.mxu0 %v1760
    %v1762 = vpop.f32.mrf.mxu0
    %v1763 = vadd.f32 %v1738, %v1762
    %1764 = vdwg.mxu0
    %1765 = vmatpush.msra.mxu0 0.0
    %1766 = vmatpush.msra.mxu0 0.0
    %1767 = vmatpush.msra.mxu0 0.0
    %1768 = vmatpush.msra.mxu0 0.0
    %1769 = vmatpush.msra.mxu0 0.0
    %1770 = vmatpush.msra.mxu0 0.0
    %1771 = vmatpush.msra.mxu0 0.0
    %1772 = vmatpush.msra.mxu0 0.0
    %1773 = vmatpush.msra.mxu0 0.0
    %1774 = vmatpush.msra.mxu0 0.0
    %1775 = vmatpush.msra.mxu0 0.0
    %1776 = vmatpush.msra.mxu0 0.0
    %1777 = vmatpush.msra.mxu0 0.0
    %1778 = vmatpush.msra.mxu0 0.0
    %v1779 = vand.u32 %v89, 4294901760
    %v1780 = vsub.f32 %v89, %v1779
    %v1781 = vand.u32 %v1780, 4294901760
    %1782 = vmatpush.msra.mxu0 %v1781
    %v1783 = vand.u32 %v88, 4294901760
    %v1784 = vsub.f32 %v88, %v1783
    %v1785 = vand.u32 %v1784, 4294901760
    %1786 = vmatpush.msra.mxu0 %v1785
    %v1787 = vand.u32 %v1654, 4294901760
    %1788 = vmatmul.f32.gmra.mxu0 %v1787
    %v1789 = vpop.f32.mrf.mxu0
    %v1790 = vadd.f32 %v1763, %v1789
    %1791 = vdwg.mxu0
    %1792 = vmatpush.msra.mxu0 0.0
    %1793 = vmatpush.msra.mxu0 0.0
    %1794 = vmatpush.msra.mxu0 0.0
    %1795 = vmatpush.msra.mxu0 0.0
    %1796 = vmatpush.msra.mxu0 0.0
    %1797 = vmatpush.msra.mxu0 0.0
    %1798 = vmatpush.msra.mxu0 0.0
    %1799 = vmatpush.msra.mxu0 0.0
    %1800 = vmatpush.msra.mxu0 0.0
    %1801 = vmatpush.msra.mxu0 0.0
    %1802 = vmatpush.msra.mxu0 0.0
    %1803 = vmatpush.msra.mxu0 0.0
    %1804 = vmatpush.msra.mxu0 0.0
    %1805 = vmatpush.msra.mxu0 0.0
    %v1806 = vand.u32 %v89, 4294901760
    %1807 = vmatpush.msra.mxu0 %v1806
    %v1808 = vand.u32 %v88, 4294901760
    %1809 = vmatpush.msra.mxu0 %v1808
    %v1810 = vand.u32 %v1654, 4294901760
    %1811 = vmatmul.f32.gmra.mxu0 %v1810
    %v1812 = vpop.f32.mrf.mxu0
    %v1813 = vadd.f32 %v1790, %v1812
    %1814 = vdwg.mxu0
    %v1815 = vmax.f32 %v1813, 0.0
    %v1816 = vand.u32 %v105, 4294901760
    %1817 = vmatpush.msra.mxu0 %v1816
    %v1818 = vand.u32 %v104, 4294901760
    %1819 = vmatpush.msra.mxu0 %v1818
    %v1820 = vand.u32 %v103, 4294901760
    %1821 = vmatpush.msra.mxu0 %v1820
    %v1822 = vand.u32 %v102, 4294901760
    %1823 = vmatpush.msra.mxu0 %v1822
    %v1824 = vand.u32 %v101, 4294901760
    %1825 = vmatpush.msra.mxu0 %v1824
    %v1826 = vand.u32 %v100, 4294901760
    %1827 = vmatpush.msra.mxu0 %v1826
    %v1828 = vand.u32 %v99, 4294901760
    %1829 = vmatpush.msra.mxu0 %v1828
    %v1830 = vand.u32 %v98, 4294901760
    %1831 = vmatpush.msra.mxu0 %v1830
    %v1832 = vand.u32 %v97, 4294901760
    %1833 = vmatpush.msra.mxu0 %v1832
    %v1834 = vand.u32 %v96, 4294901760
    %1835 = vmatpush.msra.mxu0 %v1834
    %v1836 = vand.u32 %v95, 4294901760
    %1837 = vmatpush.msra.mxu0 %v1836
    %v1838 = vand.u32 %v94, 4294901760
    %1839 = vmatpush.msra.mxu0 %v1838
    %v1840 = vand.u32 %v93, 4294901760
    %1841 = vmatpush.msra.mxu0 %v1840
    %v1842 = vand.u32 %v92, 4294901760
    %1843 = vmatpush.msra.mxu0 %v1842
    %v1844 = vand.u32 %v91, 4294901760
    %1845 = vmatpush.msra.mxu0 %v1844
    %v1846 = vand.u32 %v90, 4294901760
    %1847 = vmatpush.msra.mxu0 %v1846
    %v1848 = vand.u32 %v1815, 4294901760
    %v1849 = vsub.f32 %v1815, %v1848
    %v1850 = vand.u32 %v1849, 4294901760
    %v1851 = vsub.f32 %v1849, %v1850
    %v1852 = vand.u32 %v1851, 4294901760
    %1853 = vmatmul.f32.gmra.mxu0 %v1852
    %v1854 = vpop.f32.mrf.mxu0
    %v1855 = vadd.f32 %v294, %v1854
    %1856 = vdwg.mxu0
    %v1857 = vand.u32 %v105, 4294901760
    %v1858 = vsub.f32 %v105, %v1857
    %v1859 = vand.u32 %v1858, 4294901760
    %v1860 = vsub.f32 %v1858, %v1859
    %v1861 = vand.u32 %v1860, 4294901760
    %1862 = vmatpush.msra.mxu0 %v1861
    %v1863 = vand.u32 %v104, 4294901760
    %v1864 = vsub.f32 %v104, %v1863
    %v1865 = vand.u32 %v1864, 4294901760
    %v1866 = vsub.f32 %v1864, %v1865
    %v1867 = vand.u32 %v1866, 4294901760
    %1868 = vmatpush.msra.mxu0 %v1867
    %v1869 = vand.u32 %v103, 4294901760
    %v1870 = vsub.f32 %v103, %v1869
    %v1871 = vand.u32 %v1870, 4294901760
    %v1872 = vsub.f32 %v1870, %v1871
    %v1873 = vand.u32 %v1872, 4294901760
    %1874 = vmatpush.msra.mxu0 %v1873
    %v1875 = vand.u32 %v102, 4294901760
    %v1876 = vsub.f32 %v102, %v1875
    %v1877 = vand.u32 %v1876, 4294901760
    %v1878 = vsub.f32 %v1876, %v1877
    %v1879 = vand.u32 %v1878, 4294901760
    %1880 = vmatpush.msra.mxu0 %v1879
    %v1881 = vand.u32 %v101, 4294901760
    %v1882 = vsub.f32 %v101, %v1881
    %v1883 = vand.u32 %v1882, 4294901760
    %v1884 = vsub.f32 %v1882, %v1883
    %v1885 = vand.u32 %v1884, 4294901760
    %1886 = vmatpush.msra.mxu0 %v1885
    %v1887 = vand.u32 %v100, 4294901760
    %v1888 = vsub.f32 %v100, %v1887
    %v1889 = vand.u32 %v1888, 4294901760
    %v1890 = vsub.f32 %v1888, %v1889
    %v1891 = vand.u32 %v1890, 4294901760
    %1892 = vmatpush.msra.mxu0 %v1891
    %v1893 = vand.u32 %v99, 4294901760
    %v1894 = vsub.f32 %v99, %v1893
    %v1895 = vand.u32 %v1894, 4294901760
    %v1896 = vsub.f32 %v1894, %v1895
    %v1897 = vand.u32 %v1896, 4294901760
    %1898 = vmatpush.msra.mxu0 %v1897
    %v1899 = vand.u32 %v98, 4294901760
    %v1900 = vsub.f32 %v98, %v1899
    %v1901 = vand.u32 %v1900, 4294901760
    %v1902 = vsub.f32 %v1900, %v1901
    %v1903 = vand.u32 %v1902, 4294901760
    %1904 = vmatpush.msra.mxu0 %v1903
    %v1905 = vand.u32 %v97, 4294901760
    %v1906 = vsub.f32 %v97, %v1905
    %v1907 = vand.u32 %v1906, 4294901760
    %v1908 = vsub.f32 %v1906, %v1907
    %v1909 = vand.u32 %v1908, 4294901760
    %1910 = vmatpush.msra.mxu0 %v1909
    %v1911 = vand.u32 %v96, 4294901760
    %v1912 = vsub.f32 %v96, %v1911
    %v1913 = vand.u32 %v1912, 4294901760
    %v1914 = vsub.f32 %v1912, %v1913
    %v1915 = vand.u32 %v1914, 4294901760
    %1916 = vmatpush.msra.mxu0 %v1915
    %v1917 = vand.u32 %v95, 4294901760
    %v1918 = vsub.f32 %v95, %v1917
    %v1919 = vand.u32 %v1918, 4294901760
    %v1920 = vsub.f32 %v1918, %v1919
    %v1921 = vand.u32 %v1920, 4294901760
    %1922 = vmatpush.msra.mxu0 %v1921
    %v1923 = vand.u32 %v94, 4294901760
    %v1924 = vsub.f32 %v94, %v1923
    %v1925 = vand.u32 %v1924, 4294901760
    %v1926 = vsub.f32 %v1924, %v1925
    %v1927 = vand.u32 %v1926, 4294901760
    %1928 = vmatpush.msra.mxu0 %v1927
    %v1929 = vand.u32 %v93, 4294901760
    %v1930 = vsub.f32 %v93, %v1929
    %v1931 = vand.u32 %v1930, 4294901760
    %v1932 = vsub.f32 %v1930, %v1931
    %v1933 = vand.u32 %v1932, 4294901760
    %1934 = vmatpush.msra.mxu0 %v1933
    %v1935 = vand.u32 %v92, 4294901760
    %v1936 = vsub.f32 %v92, %v1935
    %v1937 = vand.u32 %v1936, 4294901760
    %v1938 = vsub.f32 %v1936, %v1937
    %v1939 = vand.u32 %v1938, 4294901760
    %1940 = vmatpush.msra.mxu0 %v1939
    %v1941 = vand.u32 %v91, 4294901760
    %v1942 = vsub.f32 %v91, %v1941
    %v1943 = vand.u32 %v1942, 4294901760
    %v1944 = vsub.f32 %v1942, %v1943
    %v1945 = vand.u32 %v1944, 4294901760
    %1946 = vmatpush.msra.mxu0 %v1945
    %v1947 = vand.u32 %v90, 4294901760
    %v1948 = vsub.f32 %v90, %v1947
    %v1949 = vand.u32 %v1948, 4294901760
    %v1950 = vsub.f32 %v1948, %v1949
    %v1951 = vand.u32 %v1950, 4294901760
    %1952 = vmatpush.msra.mxu0 %v1951
    %v1953 = vand.u32 %v1815, 4294901760
    %1954 = vmatmul.f32.gmra.mxu0 %v1953
    %v1955 = vpop.f32.mrf.mxu0
    %v1956 = vadd.f32 %v1855, %v1955
    %1957 = vdwg.mxu0
    %v1958 = vand.u32 %v105, 4294901760
    %v1959 = vsub.f32 %v105, %v1958
    %1960 = vmatpush.msra.mxu0 %v1959
    %v1961 = vand.u32 %v104, 4294901760
    %v1962 = vsub.f32 %v104, %v1961
    %1963 = vmatpush.msra.mxu0 %v1962
    %v1964 = vand.u32 %v103, 4294901760
    %v1965 = vsub.f32 %v103, %v1964
    %1966 = vmatpush.msra.mxu0 %v1965
    %v1967 = vand.u32 %v102, 4294901760
    %v1968 = vsub.f32 %v102, %v1967
    %1969 = vmatpush.msra.mxu0 %v1968
    %v1970 = vand.u32 %v101, 4294901760
    %v1971 = vsub.f32 %v101, %v1970
    %1972 = vmatpush.msra.mxu0 %v1971
    %v1973 = vand.u32 %v100, 4294901760
    %v1974 = vsub.f32 %v100, %v1973
    %1975 = vmatpush.msra.mxu0 %v1974
    %v1976 = vand.u32 %v99, 4294901760
    %v1977 = vsub.f32 %v99, %v1976
    %1978 = vmatpush.msra.mxu0 %v1977
    %v1979 = vand.u32 %v98, 4294901760
    %v1980 = vsub.f32 %v98, %v1979
    %1981 = vmatpush.msra.mxu0 %v1980
    %v1982 = vand.u32 %v97, 4294901760
    %v1983 = vsub.f32 %v97, %v1982
    %1984 = vmatpush.msra.mxu0 %v1983
    %v1985 = vand.u32 %v96, 4294901760
    %v1986 = vsub.f32 %v96, %v1985
    %1987 = vmatpush.msra.mxu0 %v1986
    %v1988 = vand.u32 %v95, 4294901760
    %v1989 = vsub.f32 %v95, %v1988
    %1990 = vmatpush.msra.mxu0 %v1989
    %v1991 = vand.u32 %v94, 4294901760
    %v1992 = vsub.f32 %v94, %v1991
    %1993 = vmatpush.msra.mxu0 %v1992
    %v1994 = vand.u32 %v93, 4294901760
    %v1995 = vsub.f32 %v93, %v1994
    %1996 = vmatpush.msra.mxu0 %v1995
    %v1997 = vand.u32 %v92, 4294901760
    %v1998 = vsub.f32 %v92, %v1997
    %1999 = vmatpush.msra.mxu0 %v1998
    %v2000 = vand.u32 %v91, 4294901760
    %v2001 = vsub.f32 %v91, %v2000
    %2002 = vmatpush.msra.mxu0 %v2001
    %v2003 = vand.u32 %v90, 4294901760
    %v2004 = vsub.f32 %v90, %v2003
    %2005 = vmatpush.msra.mxu0 %v2004
    %v2006 = vand.u32 %v1815, 4294901760
    %v2007 = vsub.f32 %v1815, %v2006
    %2008 = vmatmul.f32.gmra.mxu0 %v2007
    %v2009 = vpop.f32.mrf.mxu0
    %v2010 = vadd.f32 %v1956, %v2009
    %2011 = vdwg.mxu0
    %v2012 = vand.u32 %v105, 4294901760
    %2013 = vmatpush.msra.mxu0 %v2012
    %v2014 = vand.u32 %v104, 4294901760
    %2015 = vmatpush.msra.mxu0 %v2014
    %v2016 = vand.u32 %v103, 4294901760
    %2017 = vmatpush.msra.mxu0 %v2016
    %v2018 = vand.u32 %v102, 4294901760
    %2019 = vmatpush.msra.mxu0 %v2018
    %v2020 = vand.u32 %v101, 4294901760
    %2021 = vmatpush.msra.mxu0 %v2020
    %v2022 = vand.u32 %v100, 4294901760
    %2023 = vmatpush.msra.mxu0 %v2022
    %v2024 = vand.u32 %v99, 4294901760
    %2025 = vmatpush.msra.mxu0 %v2024
    %v2026 = vand.u32 %v98, 4294901760
    %2027 = vmatpush.msra.mxu0 %v2026
    %v2028 = vand.u32 %v97, 4294901760
    %2029 = vmatpush.msra.mxu0 %v2028
    %v2030 = vand.u32 %v96, 4294901760
    %2031 = vmatpush.msra.mxu0 %v2030
    %v2032 = vand.u32 %v95, 4294901760
    %2033 = vmatpush.msra.mxu0 %v2032
    %v2034 = vand.u32 %v94, 4294901760
    %2035 = vmatpush.msra.mxu0 %v2034
    %v2036 = vand.u32 %v93, 4294901760
    %2037 = vmatpush.msra.mxu0 %v2036
    %v2038 = vand.u32 %v92, 4294901760
    %2039 = vmatpush.msra.mxu0 %v2038
    %v2040 = vand.u32 %v91, 4294901760
    %2041 = vmatpush.msra.mxu0 %v2040
    %v2042 = vand.u32 %v90, 4294901760
    %2043 = vmatpush.msra.mxu0 %v2042
    %v2044 = vand.u32 %v1815, 4294901760
    %v2045 = vsub.f32 %v1815, %v2044
    %v2046 = vand.u32 %v2045, 4294901760
    %2047 = vmatmul.f32.gmra.mxu0 %v2046
    %v2048 = vpop.f32.mrf.mxu0
    %v2049 = vadd.f32 %v2010, %v2048
    %2050 = vdwg.mxu0
    %v2051 = vand.u32 %v105, 4294901760
    %v2052 = vsub.f32 %v105, %v2051
    %v2053 = vand.u32 %v2052, 4294901760
    %2054 = vmatpush.msra.mxu0 %v2053
    %v2055 = vand.u32 %v104, 4294901760
    %v2056 = vsub.f32 %v104, %v2055
    %v2057 = vand.u32 %v2056, 4294901760
    %2058 = vmatpush.msra.mxu0 %v2057
    %v2059 = vand.u32 %v103, 4294901760
    %v2060 = vsub.f32 %v103, %v2059
    %v2061 = vand.u32 %v2060, 4294901760
    %2062 = vmatpush.msra.mxu0 %v2061
    %v2063 = vand.u32 %v102, 4294901760
    %v2064 = vsub.f32 %v102, %v2063
    %v2065 = vand.u32 %v2064, 4294901760
    %2066 = vmatpush.msra.mxu0 %v2065
    %v2067 = vand.u32 %v101, 4294901760
    %v2068 = vsub.f32 %v101, %v2067
    %v2069 = vand.u32 %v2068, 4294901760
    %2070 = vmatpush.msra.mxu0 %v2069
    %v2071 = vand.u32 %v100, 4294901760
    %v2072 = vsub.f32 %v100, %v2071
    %v2073 = vand.u32 %v2072, 4294901760
    %2074 = vmatpush.msra.mxu0 %v2073
    %v2075 = vand.u32 %v99, 4294901760
    %v2076 = vsub.f32 %v99, %v2075
    %v2077 = vand.u32 %v2076, 4294901760
    %2078 = vmatpush.msra.mxu0 %v2077
    %v2079 = vand.u32 %v98, 4294901760
    %v2080 = vsub.f32 %v98, %v2079
    %v2081 = vand.u32 %v2080, 4294901760
    %2082 = vmatpush.msra.mxu0 %v2081
    %v2083 = vand.u32 %v97, 4294901760
    %v2084 = vsub.f32 %v97, %v2083
    %v2085 = vand.u32 %v2084, 4294901760
    %2086 = vmatpush.msra.mxu0 %v2085
    %v2087 = vand.u32 %v96, 4294901760
    %v2088 = vsub.f32 %v96, %v2087
    %v2089 = vand.u32 %v2088, 4294901760
    %2090 = vmatpush.msra.mxu0 %v2089
    %v2091 = vand.u32 %v95, 4294901760
    %v2092 = vsub.f32 %v95, %v2091
    %v2093 = vand.u32 %v2092, 4294901760
    %2094 = vmatpush.msra.mxu0 %v2093
    %v2095 = vand.u32 %v94, 4294901760
    %v2096 = vsub.f32 %v94, %v2095
    %v2097 = vand.u32 %v2096, 4294901760
    %2098 = vmatpush.msra.mxu0 %v2097
    %v2099 = vand.u32 %v93, 4294901760
    %v2100 = vsub.f32 %v93, %v2099
    %v2101 = vand.u32 %v2100, 4294901760
    %2102 = vmatpush.msra.mxu0 %v2101
    %v2103 = vand.u32 %v92, 4294901760
    %v2104 = vsub.f32 %v92, %v2103
    %v2105 = vand.u32 %v2104, 4294901760
    %2106 = vmatpush.msra.mxu0 %v2105
    %v2107 = vand.u32 %v91, 4294901760
    %v2108 = vsub.f32 %v91, %v2107
    %v2109 = vand.u32 %v2108, 4294901760
    %2110 = vmatpush.msra.mxu0 %v2109
    %v2111 = vand.u32 %v90, 4294901760
    %v2112 = vsub.f32 %v90, %v2111
    %v2113 = vand.u32 %v2112, 4294901760
    %2114 = vmatpush.msra.mxu0 %v2113
    %v2115 = vand.u32 %v1815, 4294901760
    %2116 = vmatmul.f32.gmra.mxu0 %v2115
    %v2117 = vpop.f32.mrf.mxu0
    %v2118 = vadd.f32 %v2049, %v2117
    %2119 = vdwg.mxu0
    %v2120 = vand.u32 %v105, 4294901760
    %2121 = vmatpush.msra.mxu0 %v2120
    %v2122 = vand.u32 %v104, 4294901760
    %2123 = vmatpush.msra.mxu0 %v2122
    %v2124 = vand.u32 %v103, 4294901760
    %2125 = vmatpush.msra.mxu0 %v2124
    %v2126 = vand.u32 %v102, 4294901760
    %2127 = vmatpush.msra.mxu0 %v2126
    %v2128 = vand.u32 %v101, 4294901760
    %2129 = vmatpush.msra.mxu0 %v2128
    %v2130 = vand.u32 %v100, 4294901760
    %2131 = vmatpush.msra.mxu0 %v2130
    %v2132 = vand.u32 %v99, 4294901760
    %2133 = vmatpush.msra.mxu0 %v2132
    %v2134 = vand.u32 %v98, 4294901760
    %2135 = vmatpush.msra.mxu0 %v2134
    %v2136 = vand.u32 %v97, 4294901760
    %2137 = vmatpush.msra.mxu0 %v2136
    %v2138 = vand.u32 %v96, 4294901760
    %2139 = vmatpush.msra.mxu0 %v2138
    %v2140 = vand.u32 %v95, 4294901760
    %2141 = vmatpush.msra.mxu0 %v2140
    %v2142 = vand.u32 %v94, 4294901760
    %2143 = vmatpush.msra.mxu0 %v2142
    %v2144 = vand.u32 %v93, 4294901760
    %2145 = vmatpush.msra.mxu0 %v2144
    %v2146 = vand.u32 %v92, 4294901760
    %2147 = vmatpush.msra.mxu0 %v2146
    %v2148 = vand.u32 %v91, 4294901760
    %2149 = vmatpush.msra.mxu0 %v2148
    %v2150 = vand.u32 %v90, 4294901760
    %2151 = vmatpush.msra.mxu0 %v2150
    %v2152 = vand.u32 %v1815, 4294901760
    %2153 = vmatmul.f32.gmra.mxu0 %v2152
    %v2154 = vpop.f32.mrf.mxu0
    %v2155 = vadd.f32 %v2118, %v2154
    %2156 = vdwg.mxu0
    %v2157 = vmax.f32 %v2155, 0.0
    %v2158 = vadd.f32 %v1651, %v2157
    %v2159 = vmul.f32 %v2158, 0.25
    %v2161 = vperm.slane %v124, 0
    %v2163 = vand.u32 %v121, 4294901760
    %2164 = vmatpush.msra.mxu0 %v2163
    %v2165 = vand.u32 %v120, 4294901760
    %2166 = vmatpush.msra.mxu0 %v2165
    %v2167 = vand.u32 %v119, 4294901760
    %2168 = vmatpush.msra.mxu0 %v2167
    %v2169 = vand.u32 %v118, 4294901760
    %2170 = vmatpush.msra.mxu0 %v2169
    %v2171 = vand.u32 %v117, 4294901760
    %2172 = vmatpush.msra.mxu0 %v2171
    %v2173 = vand.u32 %v116, 4294901760
    %2174 = vmatpush.msra.mxu0 %v2173
    %v2175 = vand.u32 %v115, 4294901760
    %2176 = vmatpush.msra.mxu0 %v2175
    %v2177 = vand.u32 %v114, 4294901760
    %2178 = vmatpush.msra.mxu0 %v2177
    %v2179 = vand.u32 %v113, 4294901760
    %2180 = vmatpush.msra.mxu0 %v2179
    %v2181 = vand.u32 %v112, 4294901760
    %2182 = vmatpush.msra.mxu0 %v2181
    %v2183 = vand.u32 %v111, 4294901760
    %2184 = vmatpush.msra.mxu0 %v2183
    %v2185 = vand.u32 %v110, 4294901760
    %2186 = vmatpush.msra.mxu0 %v2185
    %v2187 = vand.u32 %v109, 4294901760
    %2188 = vmatpush.msra.mxu0 %v2187
    %v2189 = vand.u32 %v108, 4294901760
    %2190 = vmatpush.msra.mxu0 %v2189
    %v2191 = vand.u32 %v107, 4294901760
    %2192 = vmatpush.msra.mxu0 %v2191
    %v2193 = vand.u32 %v106, 4294901760
    %2194 = vmatpush.msra.mxu0 %v2193
    %v2195 = vand.u32 %v2159, 4294901760
    %v2196 = vsub.f32 %v2159, %v2195
    %v2197 = vand.u32 %v2196, 4294901760
    %v2198 = vsub.f32 %v2196, %v2197
    %v2199 = vand.u32 %v2198, 4294901760
    %2200 = vmatmul.f32.gmra.mxu0 %v2199
    %v2201 = vpop.f32.mrf.mxu0
    %v2202 = vadd.f32 %v2161, %v2201
    %2203 = vdwg.mxu0
    %v2204 = vand.u32 %v121, 4294901760
    %v2205 = vsub.f32 %v121, %v2204
    %v2206 = vand.u32 %v2205, 4294901760
    %v2207 = vsub.f32 %v2205, %v2206
    %v2208 = vand.u32 %v2207, 4294901760
    %2209 = vmatpush.msra.mxu0 %v2208
    %v2210 = vand.u32 %v120, 4294901760
    %v2211 = vsub.f32 %v120, %v2210
    %v2212 = vand.u32 %v2211, 4294901760
    %v2213 = vsub.f32 %v2211, %v2212
    %v2214 = vand.u32 %v2213, 4294901760
    %2215 = vmatpush.msra.mxu0 %v2214
    %v2216 = vand.u32 %v119, 4294901760
    %v2217 = vsub.f32 %v119, %v2216
    %v2218 = vand.u32 %v2217, 4294901760
    %v2219 = vsub.f32 %v2217, %v2218
    %v2220 = vand.u32 %v2219, 4294901760
    %2221 = vmatpush.msra.mxu0 %v2220
    %v2222 = vand.u32 %v118, 4294901760
    %v2223 = vsub.f32 %v118, %v2222
    %v2224 = vand.u32 %v2223, 4294901760
    %v2225 = vsub.f32 %v2223, %v2224
    %v2226 = vand.u32 %v2225, 4294901760
    %2227 = vmatpush.msra.mxu0 %v2226
    %v2228 = vand.u32 %v117, 4294901760
    %v2229 = vsub.f32 %v117, %v2228
    %v2230 = vand.u32 %v2229, 4294901760
    %v2231 = vsub.f32 %v2229, %v2230
    %v2232 = vand.u32 %v2231, 4294901760
    %2233 = vmatpush.msra.mxu0 %v2232
    %v2234 = vand.u32 %v116, 4294901760
    %v2235 = vsub.f32 %v116, %v2234
    %v2236 = vand.u32 %v2235, 4294901760
    %v2237 = vsub.f32 %v2235, %v2236
    %v2238 = vand.u32 %v2237, 4294901760
    %2239 = vmatpush.msra.mxu0 %v2238
    %v2240 = vand.u32 %v115, 4294901760
    %v2241 = vsub.f32 %v115, %v2240
    %v2242 = vand.u32 %v2241, 4294901760
    %v2243 = vsub.f32 %v2241, %v2242
    %v2244 = vand.u32 %v2243, 4294901760
    %2245 = vmatpush.msra.mxu0 %v2244
    %v2246 = vand.u32 %v114, 4294901760
    %v2247 = vsub.f32 %v114, %v2246
    %v2248 = vand.u32 %v2247, 4294901760
    %v2249 = vsub.f32 %v2247, %v2248
    %v2250 = vand.u32 %v2249, 4294901760
    %2251 = vmatpush.msra.mxu0 %v2250
    %v2252 = vand.u32 %v113, 4294901760
    %v2253 = vsub.f32 %v113, %v2252
    %v2254 = vand.u32 %v2253, 4294901760
    %v2255 = vsub.f32 %v2253, %v2254
    %v2256 = vand.u32 %v2255, 4294901760
    %2257 = vmatpush.msra.mxu0 %v2256
    %v2258 = vand.u32 %v112, 4294901760
    %v2259 = vsub.f32 %v112, %v2258
    %v2260 = vand.u32 %v2259, 4294901760
    %v2261 = vsub.f32 %v2259, %v2260
    %v2262 = vand.u32 %v2261, 4294901760
    %2263 = vmatpush.msra.mxu0 %v2262
    %v2264 = vand.u32 %v111, 4294901760
    %v2265 = vsub.f32 %v111, %v2264
    %v2266 = vand.u32 %v2265, 4294901760
    %v2267 = vsub.f32 %v2265, %v2266
    %v2268 = vand.u32 %v2267, 4294901760
    %2269 = vmatpush.msra.mxu0 %v2268
    %v2270 = vand.u32 %v110, 4294901760
    %v2271 = vsub.f32 %v110, %v2270
    %v2272 = vand.u32 %v2271, 4294901760
    %v2273 = vsub.f32 %v2271, %v2272
    %v2274 = vand.u32 %v2273, 4294901760
    %2275 = vmatpush.msra.mxu0 %v2274
    %v2276 = vand.u32 %v109, 4294901760
    %v2277 = vsub.f32 %v109, %v2276
    %v2278 = vand.u32 %v2277, 4294901760
    %v2279 = vsub.f32 %v2277, %v2278
    %v2280 = vand.u32 %v2279, 4294901760
    %2281 = vmatpush.msra.mxu0 %v2280
    %v2282 = vand.u32 %v108, 4294901760
    %v2283 = vsub.f32 %v108, %v2282
    %v2284 = vand.u32 %v2283, 4294901760
    %v2285 = vsub.f32 %v2283, %v2284
    %v2286 = vand.u32 %v2285, 4294901760
    %2287 = vmatpush.msra.mxu0 %v2286
    %v2288 = vand.u32 %v107, 4294901760
    %v2289 = vsub.f32 %v107, %v2288
    %v2290 = vand.u32 %v2289, 4294901760
    %v2291 = vsub.f32 %v2289, %v2290
    %v2292 = vand.u32 %v2291, 4294901760
    %2293 = vmatpush.msra.mxu0 %v2292
    %v2294 = vand.u32 %v106, 4294901760
    %v2295 = vsub.f32 %v106, %v2294
    %v2296 = vand.u32 %v2295, 4294901760
    %v2297 = vsub.f32 %v2295, %v2296
    %v2298 = vand.u32 %v2297, 4294901760
    %2299 = vmatpush.msra.mxu0 %v2298
    %v2300 = vand.u32 %v2159, 4294901760
    %2301 = vmatmul.f32.gmra.mxu0 %v2300
    %v2302 = vpop.f32.mrf.mxu0
    %v2303 = vadd.f32 %v2202, %v2302
    %2304 = vdwg.mxu0
    %v2305 = vand.u32 %v121, 4294901760
    %v2306 = vsub.f32 %v121, %v2305
    %2307 = vmatpush.msra.mxu0 %v2306
    %v2308 = vand.u32 %v120, 4294901760
    %v2309 = vsub.f32 %v120, %v2308
    %2310 = vmatpush.msra.mxu0 %v2309
    %v2311 = vand.u32 %v119, 4294901760
    %v2312 = vsub.f32 %v119, %v2311
    %2313 = vmatpush.msra.mxu0 %v2312
    %v2314 = vand.u32 %v118, 4294901760
    %v2315 = vsub.f32 %v118, %v2314
    %2316 = vmatpush.msra.mxu0 %v2315
    %v2317 = vand.u32 %v117, 4294901760
    %v2318 = vsub.f32 %v117, %v2317
    %2319 = vmatpush.msra.mxu0 %v2318
    %v2320 = vand.u32 %v116, 4294901760
    %v2321 = vsub.f32 %v116, %v2320
    %2322 = vmatpush.msra.mxu0 %v2321
    %v2323 = vand.u32 %v115, 4294901760
    %v2324 = vsub.f32 %v115, %v2323
    %2325 = vmatpush.msra.mxu0 %v2324
    %v2326 = vand.u32 %v114, 4294901760
    %v2327 = vsub.f32 %v114, %v2326
    %2328 = vmatpush.msra.mxu0 %v2327
    %v2329 = vand.u32 %v113, 4294901760
    %v2330 = vsub.f32 %v113, %v2329
    %2331 = vmatpush.msra.mxu0 %v2330
    %v2332 = vand.u32 %v112, 4294901760
    %v2333 = vsub.f32 %v112, %v2332
    %2334 = vmatpush.msra.mxu0 %v2333
    %v2335 = vand.u32 %v111, 4294901760
    %v2336 = vsub.f32 %v111, %v2335
    %2337 = vmatpush.msra.mxu0 %v2336
    %v2338 = vand.u32 %v110, 4294901760
    %v2339 = vsub.f32 %v110, %v2338
    %2340 = vmatpush.msra.mxu0 %v2339
    %v2341 = vand.u32 %v109, 4294901760
    %v2342 = vsub.f32 %v109, %v2341
    %2343 = vmatpush.msra.mxu0 %v2342
    %v2344 = vand.u32 %v108, 4294901760
    %v2345 = vsub.f32 %v108, %v2344
    %2346 = vmatpush.msra.mxu0 %v2345
    %v2347 = vand.u32 %v107, 4294901760
    %v2348 = vsub.f32 %v107, %v2347
    %2349 = vmatpush.msra.mxu0 %v2348
    %v2350 = vand.u32 %v106, 4294901760
    %v2351 = vsub.f32 %v106, %v2350
    %2352 = vmatpush.msra.mxu0 %v2351
    %v2353 = vand.u32 %v2159, 4294901760
    %v2354 = vsub.f32 %v2159, %v2353
    %2355 = vmatmul.f32.gmra.mxu0 %v2354
    %v2356 = vpop.f32.mrf.mxu0
    %v2357 = vadd.f32 %v2303, %v2356
    %2358 = vdwg.mxu0
    %v2359 = vand.u32 %v121, 4294901760
    %2360 = vmatpush.msra.mxu0 %v2359
    %v2361 = vand.u32 %v120, 4294901760
    %2362 = vmatpush.msra.mxu0 %v2361
    %v2363 = vand.u32 %v119, 4294901760
    %2364 = vmatpush.msra.mxu0 %v2363
    %v2365 = vand.u32 %v118, 4294901760
    %2366 = vmatpush.msra.mxu0 %v2365
    %v2367 = vand.u32 %v117, 4294901760
    %2368 = vmatpush.msra.mxu0 %v2367
    %v2369 = vand.u32 %v116, 4294901760
    %2370 = vmatpush.msra.mxu0 %v2369
    %v2371 = vand.u32 %v115, 4294901760
    %2372 = vmatpush.msra.mxu0 %v2371
    %v2373 = vand.u32 %v114, 4294901760
    %2374 = vmatpush.msra.mxu0 %v2373
    %v2375 = vand.u32 %v113, 4294901760
    %2376 = vmatpush.msra.mxu0 %v2375
    %v2377 = vand.u32 %v112, 4294901760
    %2378 = vmatpush.msra.mxu0 %v2377
    %v2379 = vand.u32 %v111, 4294901760
    %2380 = vmatpush.msra.mxu0 %v2379
    %v2381 = vand.u32 %v110, 4294901760
    %2382 = vmatpush.msra.mxu0 %v2381
    %v2383 = vand.u32 %v109, 4294901760
    %2384 = vmatpush.msra.mxu0 %v2383
    %v2385 = vand.u32 %v108, 4294901760
    %2386 = vmatpush.msra.mxu0 %v2385
    %v2387 = vand.u32 %v107, 4294901760
    %2388 = vmatpush.msra.mxu0 %v2387
    %v2389 = vand.u32 %v106, 4294901760
    %2390 = vmatpush.msra.mxu0 %v2389
    %v2391 = vand.u32 %v2159, 4294901760
    %v2392 = vsub.f32 %v2159, %v2391
    %v2393 = vand.u32 %v2392, 4294901760
    %2394 = vmatmul.f32.gmra.mxu0 %v2393
    %v2395 = vpop.f32.mrf.mxu0
    %v2396 = vadd.f32 %v2357, %v2395
    %2397 = vdwg.mxu0
    %v2398 = vand.u32 %v121, 4294901760
    %v2399 = vsub.f32 %v121, %v2398
    %v2400 = vand.u32 %v2399, 4294901760
    %2401 = vmatpush.msra.mxu0 %v2400
    %v2402 = vand.u32 %v120, 4294901760
    %v2403 = vsub.f32 %v120, %v2402
    %v2404 = vand.u32 %v2403, 4294901760
    %2405 = vmatpush.msra.mxu0 %v2404
    %v2406 = vand.u32 %v119, 4294901760
    %v2407 = vsub.f32 %v119, %v2406
    %v2408 = vand.u32 %v2407, 4294901760
    %2409 = vmatpush.msra.mxu0 %v2408
    %v2410 = vand.u32 %v118, 4294901760
    %v2411 = vsub.f32 %v118, %v2410
    %v2412 = vand.u32 %v2411, 4294901760
    %2413 = vmatpush.msra.mxu0 %v2412
    %v2414 = vand.u32 %v117, 4294901760
    %v2415 = vsub.f32 %v117, %v2414
    %v2416 = vand.u32 %v2415, 4294901760
    %2417 = vmatpush.msra.mxu0 %v2416
    %v2418 = vand.u32 %v116, 4294901760
    %v2419 = vsub.f32 %v116, %v2418
    %v2420 = vand.u32 %v2419, 4294901760
    %2421 = vmatpush.msra.mxu0 %v2420
    %v2422 = vand.u32 %v115, 4294901760
    %v2423 = vsub.f32 %v115, %v2422
    %v2424 = vand.u32 %v2423, 4294901760
    %2425 = vmatpush.msra.mxu0 %v2424
    %v2426 = vand.u32 %v114, 4294901760
    %v2427 = vsub.f32 %v114, %v2426
    %v2428 = vand.u32 %v2427, 4294901760
    %2429 = vmatpush.msra.mxu0 %v2428
    %v2430 = vand.u32 %v113, 4294901760
    %v2431 = vsub.f32 %v113, %v2430
    %v2432 = vand.u32 %v2431, 4294901760
    %2433 = vmatpush.msra.mxu0 %v2432
    %v2434 = vand.u32 %v112, 4294901760
    %v2435 = vsub.f32 %v112, %v2434
    %v2436 = vand.u32 %v2435, 4294901760
    %2437 = vmatpush.msra.mxu0 %v2436
    %v2438 = vand.u32 %v111, 4294901760
    %v2439 = vsub.f32 %v111, %v2438
    %v2440 = vand.u32 %v2439, 4294901760
    %2441 = vmatpush.msra.mxu0 %v2440
    %v2442 = vand.u32 %v110, 4294901760
    %v2443 = vsub.f32 %v110, %v2442
    %v2444 = vand.u32 %v2443, 4294901760
    %2445 = vmatpush.msra.mxu0 %v2444
    %v2446 = vand.u32 %v109, 4294901760
    %v2447 = vsub.f32 %v109, %v2446
    %v2448 = vand.u32 %v2447, 4294901760
    %2449 = vmatpush.msra.mxu0 %v2448
    %v2450 = vand.u32 %v108, 4294901760
    %v2451 = vsub.f32 %v108, %v2450
    %v2452 = vand.u32 %v2451, 4294901760
    %2453 = vmatpush.msra.mxu0 %v2452
    %v2454 = vand.u32 %v107, 4294901760
    %v2455 = vsub.f32 %v107, %v2454
    %v2456 = vand.u32 %v2455, 4294901760
    %2457 = vmatpush.msra.mxu0 %v2456
    %v2458 = vand.u32 %v106, 4294901760
    %v2459 = vsub.f32 %v106, %v2458
    %v2460 = vand.u32 %v2459, 4294901760
    %2461 = vmatpush.msra.mxu0 %v2460
    %v2462 = vand.u32 %v2159, 4294901760
    %2463 = vmatmul.f32.gmra.mxu0 %v2462
    %v2464 = vpop.f32.mrf.mxu0
    %v2465 = vadd.f32 %v2396, %v2464
    %2466 = vdwg.mxu0
    %v2467 = vand.u32 %v121, 4294901760
    %2468 = vmatpush.msra.mxu0 %v2467
    %v2469 = vand.u32 %v120, 4294901760
    %2470 = vmatpush.msra.mxu0 %v2469
    %v2471 = vand.u32 %v119, 4294901760
    %2472 = vmatpush.msra.mxu0 %v2471
    %v2473 = vand.u32 %v118, 4294901760
    %2474 = vmatpush.msra.mxu0 %v2473
    %v2475 = vand.u32 %v117, 4294901760
    %2476 = vmatpush.msra.mxu0 %v2475
    %v2477 = vand.u32 %v116, 4294901760
    %2478 = vmatpush.msra.mxu0 %v2477
    %v2479 = vand.u32 %v115, 4294901760
    %2480 = vmatpush.msra.mxu0 %v2479
    %v2481 = vand.u32 %v114, 4294901760
    %2482 = vmatpush.msra.mxu0 %v2481
    %v2483 = vand.u32 %v113, 4294901760
    %2484 = vmatpush.msra.mxu0 %v2483
    %v2485 = vand.u32 %v112, 4294901760
    %2486 = vmatpush.msra.mxu0 %v2485
    %v2487 = vand.u32 %v111, 4294901760
    %2488 = vmatpush.msra.mxu0 %v2487
    %v2489 = vand.u32 %v110, 4294901760
    %2490 = vmatpush.msra.mxu0 %v2489
    %v2491 = vand.u32 %v109, 4294901760
    %2492 = vmatpush.msra.mxu0 %v2491
    %v2493 = vand.u32 %v108, 4294901760
    %2494 = vmatpush.msra.mxu0 %v2493
    %v2495 = vand.u32 %v107, 4294901760
    %2496 = vmatpush.msra.mxu0 %v2495
    %v2497 = vand.u32 %v106, 4294901760
    %2498 = vmatpush.msra.mxu0 %v2497
    %v2499 = vand.u32 %v2159, 4294901760
    %2500 = vmatmul.f32.gmra.mxu0 %v2499
    %v2501 = vpop.f32.mrf.mxu0
    %v2502 = vadd.f32 %v2465, %v2501
    %2503 = vdwg.mxu0
    %2504 = vst [vmem:[#allocation10] sm:$0x3] %v2502
    // Predicated region
    $region46: #{tpu_custom_call.1} parent=1 // pred_check
      _
    $region47: #{tpu_custom_call.1} parent=1 // pred_check_branch
      %2506 = sbr.rel (0) target = $region49
    $region48: #{tpu_custom_call.1} parent=1 // pred_region
      %2508 = vsyncadd [#allocation4], 0
      %s2510 = sshll.u32 [#allocation10], 4
      %s2511 = int_to_ptr.vmem [resolvable:$true] %s2510
      %s2512 = sshll.u32 %s7, 4
      %s2513 = int_to_ptr.hbm [resolvable:$true] %s2512
      %2515 = dma.vmem_to_hbm [thread:$0]  %s2511, 32, %s2513, [#allocation4]
    $region49: #{tpu_custom_call.1} parent=1 // pred_fallthru
      _
    // Predicated region
    $region50: #{tpu_custom_call.1} parent=1 // pred_check
      _
    $region51: #{tpu_custom_call.1} parent=1 // pred_check_branch
      %2517 = sbr.rel (0) target = $region53
    $region52: #{tpu_custom_call.1} parent=1 // pred_region
      %2519 = dma.done [#allocation4], 32
    $region53: #{tpu_custom_call.1} parent=1 // pred_fallthru
      _
    %2520 = vsyncpa [#allocation3], 1
    %2521 = vsyncpa [#allocation6], 1
    %2522 = vsyncpa [#allocation9], 1
    %2523 = vsyncpa [#allocation4], 1

</llo_original>
